<compile_context>
chip_gen: v7x
topology: tpu7x:2x2x1
jax: 0.10.0
libtpu: 0.0.40
codegen_flags: <defaults>
</compile_context>

<pallas_src>
import functools

import numpy as np
import jax
import jax.numpy as jnp
from jax import lax
from jax.experimental import pallas as pl
from jax.experimental.pallas import tpu as pltpu

SELU_ALPHA = 1.6732632423543772
SELU_SCALE = 1.0507009873554805
BN_EPS = 1e-5


def _selu(x):
    return SELU_SCALE * jnp.where(x > 0, x, SELU_ALPHA * (jnp.exp(x) - 1.0))


# ----------------------------------------------------------------------------- kernel
def _convblock_kernel(x3_ref, w1_ref, aff1_ref, w2_ref, aff2_ref, mask_ref,
                      o_ref, h1p, h2s, *, M, WC2):
    # ---- conv1 (3x3, s=1, p=1): ONE fused-K bf16 matmul, f32 accumulation ----
    # x3 rows = nb images * H rows;  K = 3*W*Cin (dy taps pre-concatenated;
    # width padding is folded into the banded weight matrix).
    z1 = jnp.dot(x3_ref[...], w1_ref[...], preferred_element_type=jnp.float32)
    # bias -> SELU -> BatchNorm(eval) affine;  Dropout(0.2) -> identity (eval).
    h1 = (_selu(z1 + aff1_ref[pl.ds(0, 1), :]) * aff1_ref[pl.ds(1, 1), :]
          + aff1_ref[pl.ds(2, 1), :])

    # ---- stage h1 (bf16) in a row-padded slab for conv2's dy taps ------------
    # Only the two border rows are zeroed (NaN-safety for uninitialized VMEM);
    # interior image seams are zeroed by the tap masks below.
    h1p[pl.ds(0, 1), :] = jnp.zeros((1, WC2), jnp.bfloat16)
    h1p[pl.ds(M + 1, 1), :] = jnp.zeros((1, WC2), jnp.bfloat16)
    h1p[pl.ds(1, M), :] = h1.astype(jnp.bfloat16)

    up = h1p[pl.ds(0, M), :] * mask_ref[:, 0:1]     # row above (0 across seams)
    mid = h1p[pl.ds(1, M), :]
    dn = h1p[pl.ds(2, M), :] * mask_ref[:, 1:2]     # row below (0 across seams)

    # ---- conv2: 3 banded bf16 matmuls (K = W*Cout), f32 accumulation ---------
    acc2 = jnp.dot(up, w2_ref[0], preferred_element_type=jnp.float32)
    acc2 = acc2 + jnp.dot(mid, w2_ref[1], preferred_element_type=jnp.float32)
    acc2 = acc2 + jnp.dot(dn, w2_ref[2], preferred_element_type=jnp.float32)
    h2 = (_selu(acc2 + aff2_ref[pl.ds(0, 1), :]) * aff2_ref[pl.ds(1, 1), :]
          + aff2_ref[pl.ds(2, 1), :])

    # ---- MaxPool2d(2), row half: adjacent-row max via strided VPU reads ------
    # (H is even, so pooled row pairs never straddle an image boundary.)
    h2s[...] = h2
    o_ref[...] = jnp.maximum(h2s[pl.ds(0, M // 2, stride=2), :],
                             h2s[pl.ds(1, M // 2, stride=2), :])
    # Column half of the pool + final Dropout (identity, eval) happen in the
    # wrapper epilogue so the stored tile stays lane-dense (last dim = W*Cout).


# ----------------------------------------------------------------------------- glue
def _conv_band_matrices(K, W_sp, Cin, Cout):
    """K: (Cout, Cin, 3, 3) OIHW -> (3, W_sp*Cin, W_sp*Cout) block-Toeplitz bands.
    Row `dy` encodes all dx taps + channel mixing + width-1 zero padding."""
    K = np.asarray(K, np.float32)
    M = np.zeros((3, W_sp * Cin, W_sp * Cout), np.float32)
    for dy in range(3):
        for dx in range(3):
            blk = K[:, :, dy, dx].T                               # (Cin, Cout)
            for w in range(W_sp):
                wi = w + dx - 1
                if 0 <= wi < W_sp:
                    M[dy, wi * Cin:(wi + 1) * Cin, w * Cout:(w + 1) * Cout] = blk
    return M


def conv_block(x, p, *, nb=8):
    """x: (N, Cin, H, W) float32 (NCHW, like PyTorch).  Returns (N, Cout, H//2, W//2)."""
    N, Cin, H, W = x.shape
    Cout = p["w1"].shape[0]
    assert H % 2 == 0 and W % 2 == 0
    Ho, Wo = H // 2, W // 2
    WCin, WC2 = W * Cin, W * Cout

    # ---- batch images into blocks of `nb`, stacked along the sublane axis ----
    nb = max(1, min(nb, N))
    nblk = pl.cdiv(N, nb)
    Npad = nblk * nb
    if Npad != N:
        x = jnp.concatenate([x, jnp.zeros((Npad - N, Cin, H, W), x.dtype)], axis=0)
    M = nb * H                                       # MXU rows per grid step

    # NCHW -> (N, H, W*Cin); pad H by 1; pre-concatenate the 3 dy taps so conv1
    # is a single matmul with K = 3*W*Cin.
    xt = jnp.transpose(x, (0, 2, 3, 1)).reshape(Npad, H, WCin)
    xpad = jnp.pad(xt, ((0, 0), (1, 1), (0, 0)))
    x3 = jnp.concatenate([xpad[:, 0:H], xpad[:, 1:H + 1], xpad[:, 2:H + 2]], axis=2)
    x3 = x3.reshape(Npad * H, 3 * WCin).astype(jnp.bfloat16)

    # Banded conv weights as bf16 MXU operands.
    w1f = jnp.asarray(_conv_band_matrices(p["w1"], W, Cin, Cout)
                      .reshape(3 * WCin, WC2), jnp.bfloat16)
    w2b = jnp.asarray(_conv_band_matrices(p["w2"], W, Cout, Cout), jnp.bfloat16)

    # Conv bias + BatchNorm(eval) folded into per-channel epilogue rows (f32).
    def bn_affine(gamma, beta, mean, var):
        s = gamma / jnp.sqrt(var + BN_EPS)
        return s, beta - mean * s

    s1, t1 = bn_affine(p["g1"], p["b1n"], p["m1"], p["v1"])
    s2, t2 = bn_affine(p["g2"], p["b2n"], p["m2"], p["v2"])
    aff1 = jnp.stack([jnp.tile(p["b1"], W), jnp.tile(s1, W), jnp.tile(t1, W)]).astype(jnp.float32)
    aff2 = jnp.stack([jnp.tile(p["b2"], W), jnp.tile(s2, W), jnp.tile(t2, W)]).astype(jnp.float32)

    # conv2 dy-tap masks: zero the up/down taps across image seams in the
    # stacked slab (col 0 = "row above is in-image", col 1 = "row below is in-image").
    rows = np.arange(M)
    tapmask = jnp.asarray(
        np.stack([(rows % H != 0), (rows % H != H - 1)], axis=1).astype(np.float32),
        jnp.bfloat16)

    kernel = functools.partial(_convblock_kernel, M=M, WC2=WC2)
    rowpooled = pl.pallas_call(
        kernel,
        out_shape=jax.ShapeDtypeStruct((Npad * Ho, WC2), jnp.float32),
        grid_spec=pltpu.PrefetchScalarGridSpec(
            num_scalar_prefetch=0,
            grid=(nblk,),
            in_specs=[
                pl.BlockSpec((M, 3 * WCin), lambda n: (n, 0)),        # fused conv1 input
                pl.BlockSpec((3 * WCin, WC2), lambda n: (0, 0)),      # fused conv1 weights
                pl.BlockSpec((3, WC2), lambda n: (0, 0)),             # bias/scale/shift 1
                pl.BlockSpec((3, WC2, WC2), lambda n: (0, 0, 0)),     # conv2 band weights
                pl.BlockSpec((3, WC2), lambda n: (0, 0)),             # bias/scale/shift 2
                pl.BlockSpec((M, 2), lambda n: (0, 0)),               # dy-tap seam masks
            ],
            out_specs=pl.BlockSpec((nb * Ho, WC2), lambda n: (n, 0)),
            scratch_shapes=[
                pltpu.VMEM((M + 2, WC2), jnp.bfloat16),   # row-padded h1 slab
                pltpu.VMEM((M, WC2), jnp.float32),        # h2 staging for the row pool
            ],
        ),
        compiler_params=pltpu.CompilerParams(
            dimension_semantics=("parallel",)),
    )(x3, w1f, aff1, w2b, aff2, tapmask)

    # Epilogue: drop batch padding, column half of MaxPool2d(2), -> NCHW.
    y = rowpooled[:N * Ho].reshape(N, Ho, Wo, 2, Cout)
    return jnp.max(y, axis=3).transpose(0, 3, 1, 2)


# ----------------------------------------------------------------------------- reference
def ref_forward(x, p):
    def conv(x, w, b):
        y = lax.conv_general_dilated(x, w, (1, 1), ((1, 1), (1, 1)),
                                     dimension_numbers=("NCHW", "OIHW", "NCHW"),
                                     precision=lax.Precision.HIGHEST)
        return y + b[None, :, None, None]

    def bn(x, g, b, m, v):
        return ((x - m[None, :, None, None]) / jnp.sqrt(v + BN_EPS)[None, :, None, None]
                * g[None, :, None, None] + b[None, :, None, None])

    y = bn(_selu(conv(x, p["w1"], p["b1"])), p["g1"], p["b1n"], p["m1"], p["v1"])
    y = bn(_selu(conv(y, p["w2"], p["b2"])), p["g2"], p["b2n"], p["m2"], p["v2"])
    N, C, H, W = y.shape
    return y.reshape(N, C, H // 2, 2, W // 2, 2).max(axis=(3, 5))


# ----------------------------------------------------------------------------- main
if __name__ == "__main__":
    N, Cin, Cout, H, W = 16, 4, 8, 16, 16
    key = jax.random.PRNGKey(0)
    ks = jax.random.split(key, 13)
    bnd1 = 1.0 / np.sqrt(Cin * 9)
    bnd2 = 1.0 / np.sqrt(Cout * 9)
    params = dict(
        w1=jax.random.uniform(ks[0], (Cout, Cin, 3, 3), jnp.float32, -bnd1, bnd1),
        b1=jax.random.uniform(ks[1], (Cout,), jnp.float32, -bnd1, bnd1),
        g1=jax.random.uniform(ks[2], (Cout,), jnp.float32, 0.8, 1.2),
        b1n=jax.random.uniform(ks[3], (Cout,), jnp.float32, -0.1, 0.1),
        m1=jax.random.uniform(ks[4], (Cout,), jnp.float32, -0.1, 0.1),
        v1=jax.random.uniform(ks[5], (Cout,), jnp.float32, 0.5, 1.5),
        w2=jax.random.uniform(ks[6], (Cout, Cout, 3, 3), jnp.float32, -bnd2, bnd2),
        b2=jax.random.uniform(ks[7], (Cout,), jnp.float32, -bnd2, bnd2),
        g2=jax.random.uniform(ks[8], (Cout,), jnp.float32, 0.8, 1.2),
        b2n=jax.random.uniform(ks[9], (Cout,), jnp.float32, -0.1, 0.1),
        m2=jax.random.uniform(ks[10], (Cout,), jnp.float32, -0.1, 0.1),
        v2=jax.random.uniform(ks[11], (Cout,), jnp.float32, 0.5, 1.5),
    )
    x = jax.random.normal(ks[12], (N, Cin, H, W), jnp.float32)

    out = jax.block_until_ready(conv_block(x, params))
    ref = ref_forward(x, params)

    assert out.shape == (N, Cout, H // 2, W // 2)
    np.testing.assert_allclose(np.asarray(out), np.asarray(ref), atol=2e-2, rtol=2e-2)
    print("KERNEL_OK")
</pallas_src>

<mosaic_0001>
module attributes {stable_mosaic.version = 11 : i64} {
  func.func @_convblock_kernel(%arg0: i32, %arg1: memref<128x192xbf16, #tpu.memory_space<vmem>>, %arg2: memref<192x128xbf16, #tpu.memory_space<vmem>>, %arg3: memref<3x128xf32, #tpu.memory_space<vmem>>, %arg4: memref<3x128x128xbf16, #tpu.memory_space<vmem>>, %arg5: memref<3x128xf32, #tpu.memory_space<vmem>>, %arg6: memref<128x2xbf16, #tpu.memory_space<vmem>>, %arg7: memref<64x128xf32, #tpu.memory_space<vmem>>, %arg8: memref<130x128xbf16, #tpu.memory_space<vmem>>, %arg9: memref<128x128xf32, #tpu.memory_space<vmem>>) attributes {dimension_semantics = [#tpu.dimension_semantics<parallel>], iteration_bounds = array<i64: 2>, scalar_prefetch = 0 : i64, scratch_operands = 2 : i64, tpu.core_type = #tpu.core_type<tc>, window_params = [{transform_indices = @transform_0, window_bounds = array<i64: 128, 192>}, {pipeline_mode = #tpu.pipeline_mode<synchronous>, transform_indices = @transform_1, window_bounds = array<i64: 192, 128>}, {pipeline_mode = #tpu.pipeline_mode<synchronous>, transform_indices = @transform_2, window_bounds = array<i64: 3, 128>}, {pipeline_mode = #tpu.pipeline_mode<synchronous>, transform_indices = @transform_3, window_bounds = array<i64: 3, 128, 128>}, {pipeline_mode = #tpu.pipeline_mode<synchronous>, transform_indices = @transform_4, window_bounds = array<i64: 3, 128>}, {pipeline_mode = #tpu.pipeline_mode<synchronous>, transform_indices = @transform_5, window_bounds = array<i64: 128, 2>}, {transform_indices = @transform_6, window_bounds = array<i64: 64, 128>}]} {
    %c0 = arith.constant 0 : index
    %c0_0 = arith.constant 0 : index
    %0 = vector.load %arg1[%c0, %c0_0] : memref<128x192xbf16, #tpu.memory_space<vmem>>, vector<128x192xbf16>
    %c0_1 = arith.constant 0 : index
    %c0_2 = arith.constant 0 : index
    %1 = vector.load %arg2[%c0_1, %c0_2] : memref<192x128xbf16, #tpu.memory_space<vmem>>, vector<192x128xbf16>
    %cst = arith.constant dense<0.000000e+00> : vector<128x128xf32>
    %2 = tpu.matmul %0, %1, %cst {dimension_numbers = #tpu.dot_dimension_numbers<[1], [0], [0], [1], [0, 0, 1, 1], [], []>} : vector<128x192xbf16>, vector<192x128xbf16>, vector<128x128xf32> -> vector<128x128xf32>
    %c0_3 = arith.constant 0 : index
    %c0_4 = arith.constant 0 : index
    %3 = vector.load %arg3[%c0_3, %c0_4] : memref<3x128xf32, #tpu.memory_space<vmem>>, vector<1x128xf32>
    %4 = vector.broadcast %3 : vector<1x128xf32> to vector<128x128xf32>
    %5 = arith.addf %2, %4 : vector<128x128xf32>
    %cst_5 = arith.constant 0.000000e+00 : f32
    %6 = vector.broadcast %cst_5 : f32 to vector<128x128xf32>
    %7 = arith.cmpf ogt, %5, %6 : vector<128x128xf32>
    %8 = math.exp %5 : vector<128x128xf32>
    %cst_6 = arith.constant 1.000000e+00 : f32
    %9 = vector.broadcast %cst_6 : f32 to vector<128x128xf32>
    %10 = arith.subf %8, %9 : vector<128x128xf32>
    %cst_7 = arith.constant 1.67326319 : f32
    %11 = vector.broadcast %cst_7 : f32 to vector<128x128xf32>
    %12 = arith.mulf %11, %10 : vector<128x128xf32>
    %13 = arith.select %7, %5, %12 : vector<128x128xi1>, vector<128x128xf32>
    %cst_8 = arith.constant 1.05070102 : f32
    %14 = vector.broadcast %cst_8 : f32 to vector<128x128xf32>
    %15 = arith.mulf %14, %13 : vector<128x128xf32>
    %c1 = arith.constant 1 : index
    %c0_9 = arith.constant 0 : index
    %16 = vector.load %arg3[%c1, %c0_9] : memref<3x128xf32, #tpu.memory_space<vmem>>, vector<1x128xf32>
    %17 = vector.broadcast %16 : vector<1x128xf32> to vector<128x128xf32>
    %18 = arith.mulf %15, %17 : vector<128x128xf32>
    %c2 = arith.constant 2 : index
    %c0_10 = arith.constant 0 : index
    %19 = vector.load %arg3[%c2, %c0_10] : memref<3x128xf32, #tpu.memory_space<vmem>>, vector<1x128xf32>
    %20 = vector.broadcast %19 : vector<1x128xf32> to vector<128x128xf32>
    %21 = arith.addf %18, %20 : vector<128x128xf32>
    %cst_11 = arith.constant 0.000000e+00 : bf16
    %22 = vector.broadcast %cst_11 : bf16 to vector<1x128xbf16>
    %c0_12 = arith.constant 0 : index
    %c0_13 = arith.constant 0 : index
    %23 = vector.load %arg8[%c0_12, %c0_13] : memref<130x128xbf16, #tpu.memory_space<vmem>>, vector<1x128xbf16>
    tpu.vector_store %arg8[%c0_12, %c0_13], %22 {strides = array<i32>} : memref<130x128xbf16, #tpu.memory_space<vmem>>, vector<1x128xbf16>,
    %cst_14 = arith.constant 0.000000e+00 : bf16
    %24 = vector.broadcast %cst_14 : bf16 to vector<1x128xbf16>
    %c129 = arith.constant 129 : index
    %c0_15 = arith.constant 0 : index
    %25 = vector.load %arg8[%c129, %c0_15] : memref<130x128xbf16, #tpu.memory_space<vmem>>, vector<1x128xbf16>
    tpu.vector_store %arg8[%c129, %c0_15], %24 {strides = array<i32>} : memref<130x128xbf16, #tpu.memory_space<vmem>>, vector<1x128xbf16>,
    %26 = arith.truncf %21 : vector<128x128xf32> to vector<128x128xbf16>
    %c1_16 = arith.constant 1 : index
    %c0_17 = arith.constant 0 : index
    %27 = vector.load %arg8[%c1_16, %c0_17] : memref<130x128xbf16, #tpu.memory_space<vmem>>, vector<128x128xbf16>
    tpu.vector_store %arg8[%c1_16, %c0_17], %26 {strides = array<i32>} : memref<130x128xbf16, #tpu.memory_space<vmem>>, vector<128x128xbf16>,
    %c0_18 = arith.constant 0 : index
    %c0_19 = arith.constant 0 : index
    %28 = vector.load %arg8[%c0_18, %c0_19] : memref<130x128xbf16, #tpu.memory_space<vmem>>, vector<128x128xbf16>
    %c0_20 = arith.constant 0 : index
    %c0_21 = arith.constant 0 : index
    %29 = vector.load %arg6[%c0_20, %c0_21] : memref<128x2xbf16, #tpu.memory_space<vmem>>, vector<128x1xbf16>
    %30 = vector.broadcast %29 : vector<128x1xbf16> to vector<128x128xbf16>
    %31 = arith.mulf %28, %30 : vector<128x128xbf16>
    %c1_22 = arith.constant 1 : index
    %c0_23 = arith.constant 0 : index
    %32 = vector.load %arg8[%c1_22, %c0_23] : memref<130x128xbf16, #tpu.memory_space<vmem>>, vector<128x128xbf16>
    %c2_24 = arith.constant 2 : index
    %c0_25 = arith.constant 0 : index
    %33 = vector.load %arg8[%c2_24, %c0_25] : memref<130x128xbf16, #tpu.memory_space<vmem>>, vector<128x128xbf16>
    %c0_26 = arith.constant 0 : index
    %c1_27 = arith.constant 1 : index
    %34 = vector.load %arg6[%c0_26, %c1_27] : memref<128x2xbf16, #tpu.memory_space<vmem>>, vector<128x1xbf16>
    %35 = vector.broadcast %34 : vector<128x1xbf16> to vector<128x128xbf16>
    %36 = arith.mulf %33, %35 : vector<128x128xbf16>
    %c0_28 = arith.constant 0 : index
    %c0_29 = arith.constant 0 : index
    %c0_30 = arith.constant 0 : index
    %37 = vector.load %arg4[%c0_28, %c0_29, %c0_30] : memref<3x128x128xbf16, #tpu.memory_space<vmem>>, vector<1x128x128xbf16>
    %38 = vector.shape_cast %37 : vector<1x128x128xbf16> to vector<128x128xbf16>
    %cst_31 = arith.constant dense<0.000000e+00> : vector<128x128xf32>
    %39 = tpu.matmul %31, %38, %cst_31 {dimension_numbers = #tpu.dot_dimension_numbers<[1], [0], [0], [1], [0, 0, 1, 1], [], []>} : vector<128x128xbf16>, vector<128x128xbf16>, vector<128x128xf32> -> vector<128x128xf32>
    %c1_32 = arith.constant 1 : index
    %c0_33 = arith.constant 0 : index
    %c0_34 = arith.constant 0 : index
    %40 = vector.load %arg4[%c1_32, %c0_33, %c0_34] : memref<3x128x128xbf16, #tpu.memory_space<vmem>>, vector<1x128x128xbf16>
    %41 = vector.shape_cast %40 : vector<1x128x128xbf16> to vector<128x128xbf16>
    %cst_35 = arith.constant dense<0.000000e+00> : vector<128x128xf32>
    %42 = tpu.matmul %32, %41, %cst_35 {dimension_numbers = #tpu.dot_dimension_numbers<[1], [0], [0], [1], [0, 0, 1, 1], [], []>} : vector<128x128xbf16>, vector<128x128xbf16>, vector<128x128xf32> -> vector<128x128xf32>
    %43 = arith.addf %39, %42 : vector<128x128xf32>
    %c2_36 = arith.constant 2 : index
    %c0_37 = arith.constant 0 : index
    %c0_38 = arith.constant 0 : index
    %44 = vector.load %arg4[%c2_36, %c0_37, %c0_38] : memref<3x128x128xbf16, #tpu.memory_space<vmem>>, vector<1x128x128xbf16>
    %45 = vector.shape_cast %44 : vector<1x128x128xbf16> to vector<128x128xbf16>
    %cst_39 = arith.constant dense<0.000000e+00> : vector<128x128xf32>
    %46 = tpu.matmul %36, %45, %cst_39 {dimension_numbers = #tpu.dot_dimension_numbers<[1], [0], [0], [1], [0, 0, 1, 1], [], []>} : vector<128x128xbf16>, vector<128x128xbf16>, vector<128x128xf32> -> vector<128x128xf32>
    %47 = arith.addf %43, %46 : vector<128x128xf32>
    %c0_40 = arith.constant 0 : index
    %c0_41 = arith.constant 0 : index
    %48 = vector.load %arg5[%c0_40, %c0_41] : memref<3x128xf32, #tpu.memory_space<vmem>>, vector<1x128xf32>
    %49 = vector.broadcast %48 : vector<1x128xf32> to vector<128x128xf32>
    %50 = arith.addf %47, %49 : vector<128x128xf32>
    %cst_42 = arith.constant 0.000000e+00 : f32
    %51 = vector.broadcast %cst_42 : f32 to vector<128x128xf32>
    %52 = arith.cmpf ogt, %50, %51 : vector<128x128xf32>
    %53 = math.exp %50 : vector<128x128xf32>
    %cst_43 = arith.constant 1.000000e+00 : f32
    %54 = vector.broadcast %cst_43 : f32 to vector<128x128xf32>
    %55 = arith.subf %53, %54 : vector<128x128xf32>
    %cst_44 = arith.constant 1.67326319 : f32
    %56 = vector.broadcast %cst_44 : f32 to vector<128x128xf32>
    %57 = arith.mulf %56, %55 : vector<128x128xf32>
    %58 = arith.select %52, %50, %57 : vector<128x128xi1>, vector<128x128xf32>
    %cst_45 = arith.constant 1.05070102 : f32
    %59 = vector.broadcast %cst_45 : f32 to vector<128x128xf32>
    %60 = arith.mulf %59, %58 : vector<128x128xf32>
    %c1_46 = arith.constant 1 : index
    %c0_47 = arith.constant 0 : index
    %61 = vector.load %arg5[%c1_46, %c0_47] : memref<3x128xf32, #tpu.memory_space<vmem>>, vector<1x128xf32>
    %62 = vector.broadcast %61 : vector<1x128xf32> to vector<128x128xf32>
    %63 = arith.mulf %60, %62 : vector<128x128xf32>
    %c2_48 = arith.constant 2 : index
    %c0_49 = arith.constant 0 : index
    %64 = vector.load %arg5[%c2_48, %c0_49] : memref<3x128xf32, #tpu.memory_space<vmem>>, vector<1x128xf32>
    %65 = vector.broadcast %64 : vector<1x128xf32> to vector<128x128xf32>
    %66 = arith.addf %63, %65 : vector<128x128xf32>
    %c0_50 = arith.constant 0 : index
    %c0_51 = arith.constant 0 : index
    %67 = vector.load %arg9[%c0_50, %c0_51] : memref<128x128xf32, #tpu.memory_space<vmem>>, vector<128x128xf32>
    tpu.vector_store %arg9[%c0_50, %c0_51], %66 {strides = array<i32>} : memref<128x128xf32, #tpu.memory_space<vmem>>, vector<128x128xf32>,
    %c0_52 = arith.constant 0 : index
    %c0_53 = arith.constant 0 : index
    %68 = tpu.strided_load %arg9[%c0_52, %c0_53] {strides = array<i32: 2, 1>} : memref<128x128xf32, #tpu.memory_space<vmem>>, vector<64x128xf32>
    %c1_54 = arith.constant 1 : index
    %c0_55 = arith.constant 0 : index
    %69 = tpu.strided_load %arg9[%c1_54, %c0_55] {strides = array<i32: 2, 1>} : memref<128x128xf32, #tpu.memory_space<vmem>>, vector<64x128xf32>
    %70 = arith.maximumf %68, %69 : vector<64x128xf32>
    %c0_56 = arith.constant 0 : index
    %c0_57 = arith.constant 0 : index
    %71 = vector.load %arg7[%c0_56, %c0_57] : memref<64x128xf32, #tpu.memory_space<vmem>>, vector<64x128xf32>
    tpu.vector_store %arg7[%c0_56, %c0_57], %70 {strides = array<i32>} : memref<64x128xf32, #tpu.memory_space<vmem>>, vector<64x128xf32>,
    return
  }
  func.func @transform_0(%arg0: i32) -> (i32, i32) {
    %c0_i32 = arith.constant 0 : i32
    %c0_i32_0 = arith.constant 0 : i32
    return %arg0, %c0_i32 : i32, i32
  }
  func.func @transform_1(%arg0: i32) -> (i32, i32) {
    %c0_i32 = arith.constant 0 : i32
    %c0_i32_0 = arith.constant 0 : i32
    %c0_i32_1 = arith.constant 0 : i32
    return %c0_i32, %c0_i32_0 : i32, i32
  }
  func.func @transform_2(%arg0: i32) -> (i32, i32) {
    %c0_i32 = arith.constant 0 : i32
    %c0_i32_0 = arith.constant 0 : i32
    %c0_i32_1 = arith.constant 0 : i32
    return %c0_i32, %c0_i32_0 : i32, i32
  }
  func.func @transform_3(%arg0: i32) -> (i32, i32, i32) {
    %c0_i32 = arith.constant 0 : i32
    %c0_i32_0 = arith.constant 0 : i32
    %c0_i32_1 = arith.constant 0 : i32
    %c0_i32_2 = arith.constant 0 : i32
    return %c0_i32, %c0_i32_0, %c0_i32_1 : i32, i32, i32
  }
  func.func @transform_4(%arg0: i32) -> (i32, i32) {
    %c0_i32 = arith.constant 0 : i32
    %c0_i32_0 = arith.constant 0 : i32
    %c0_i32_1 = arith.constant 0 : i32
    return %c0_i32, %c0_i32_0 : i32, i32
  }
  func.func @transform_5(%arg0: i32) -> (i32, i32) {
    %c0_i32 = arith.constant 0 : i32
    %c0_i32_0 = arith.constant 0 : i32
    %c0_i32_1 = arith.constant 0 : i32
    return %c0_i32, %c0_i32_0 : i32, i32
  }
  func.func @transform_6(%arg0: i32) -> (i32, i32) {
    %c0_i32 = arith.constant 0 : i32
    %c0_i32_0 = arith.constant 0 : i32
    return %arg0, %c0_i32 : i32, i32
  }
}

</mosaic_0001>

<llo_original>
// kernel: tpu_custom_call.1
$region0: #{tpu_custom_call.1}
  #allocation0 [shape = 'u32[]', space=smem, size = 0x4, offset = 0x4, fixed_abs, tag = 'smem constant byte address 0x4 - core index']
  #allocation1 [shape = 'u32[144,128]{1,0:T(1,128)}', space=vmem, size = 0x12000, scoped, tag = 'internal scratch']
  #allocation2 [shape = 'bf16[130,128]{1,0:T(8,128)(2,1)}', space=vmem, size = 0x8800, scoped, tag = 'scratch operand']
  #allocation3 [shape = 'f32[128,128]{1,0:T(8,128)}', space=vmem, size = 0x10000, scoped, tag = 'scratch operand']
  %s0 = inlined_call_operand.vmem [shape: bf16[256,192], index: 0, kind: input, shape index: {}]
  %s1 = inlined_call_operand.vmem [shape: bf16[192,128], index: 1, kind: input, shape index: {}]
  %s2 = inlined_call_operand.vmem [shape: f32[3,128], index: 2, kind: input, shape index: {}]
  %s3 = inlined_call_operand.vmem [shape: bf16[3,128,128], index: 3, kind: input, shape index: {}]
  %s4 = inlined_call_operand.vmem [shape: f32[3,128], index: 4, kind: input, shape index: {}]
  %s5 = inlined_call_operand.vmem [shape: bf16[128,2], index: 5, kind: input, shape index: {}]
  %s6 = inlined_call_operand.hbm [shape: f32[128,128], index: 6, kind: output, shape index: {}]
  %s7 = sld [smem:[#allocation0]]
  $region57: #{tpu_custom_call.1} parent=0
    _
  %s9 = ssub.s32 1, %s7
  %s10 = scalar_select 0, %s9, %s7
  $region1: #{tpu_custom_call.1} parent=0
    #allocation4 [shape = 'u8[65536]{0}', space=vmem, size = 0x10000, scoped, tag = 'output window, operand 0']
    #allocation5 [shape = 's32[2]{0}', space=sflag, size = 0x8, scoped, tag = 'scoped memory for tpu_custom_call.1']
    %11 = vsyncpa [#allocation5], 0
    %s12 = scalar_lea.sflag [#allocation5], 1
    %13 = vsyncpa %s12, 0
    loop: start=0, step=1, limit=4
    $region2: #{tpu_custom_call.1} parent=1 // loop_pre_header
      _
    $region3: #{tpu_custom_call.1} parent=1 // loop_header
      %s15 = sphi 0, %s19
      %p16 = scmp.ge.s32.totalorder %s15, 4
      %s25 = sphi 0, %s27
      %s28 = sphi 0, %s25
      %s29 = sphi 0, %s28
      %s45 = sphi 0, %s29
      %s49 = sphi 0, %s49
      %s51 = sphi 0, %s49
      %s52 = sphi 0, %s51
      %s66 = sphi 0, %s52
      %s70 = sphi 0, %s70
      %s72 = sphi 0, %s70
      %s73 = sphi 0, %s72
      %s87 = sphi 0, %s73
      %s91 = sphi 0, %s91
      %s93 = sphi 0, %s91
      %s94 = sphi 0, %s93
      %s108 = sphi 0, %s94
      %s112 = sphi 0, %s112
      %s114 = sphi 0, %s112
      %s115 = sphi 0, %s114
      %s129 = sphi 0, %s115
      %s133 = sphi 0, %s133
      %s135 = sphi 0, %s133
      %s136 = sphi 0, %s135
      %s150 = sphi 0, %s136
      %s156 = sphi 0, %s158
      %s159 = sphi 0, %s156
      %s160 = sphi 0, %s159
      %s176 = sphi 0, %s160
    $region4: #{tpu_custom_call.1} parent=1 // loop_header_branch
      %18 = sbr.rel (%p16) target = $region8
    $region5: #{tpu_custom_call.1} parent=1 // loop_body
      %s20 = ssub.s32 %s15, 1
      %s21 = ssub.s32 %s15, 2
      %s22 = sadd.s32 %s15, 1
      %s23 = ssub.s32 %s15, %s22
      %p24 = scmp.eq.s32.totalorder %s23, 0
      %s26 = sadd.s32 %s25, 1
      %s27 = scalar_select %p24, %s25, %s26
      %p30 = pneg %p24
      %p31 = scmp.eq.s32.totalorder %s15, 1
      %p32 = por %p30, %p31
      %p33 = scmp.ne.s32.totalorder %s25, %s28
      %p34 = scmp.eq.s32.totalorder %s15, 0
      %p35 = por %p33, %p34
      %p36 = scmp.ne.s32.totalorder %s25, %s28
      %p37 = scmp.eq.s32.totalorder %s20, 1
      %p38 = por %p36, %p37
      %p39 = scmp.ne.s32.totalorder %s28, %s29
      %p40 = scmp.eq.s32.totalorder %s20, 0
      %p41 = por %p39, %p40
      %p42 = scmp.ne.s32.totalorder %s28, %s29
      %p43 = scmp.eq.s32.totalorder %s21, 1
      %p44 = por %p42, %p43
      %p46 = scmp.ne.s32.totalorder %s29, %s45
      %p47 = scmp.eq.s32.totalorder %s21, 0
      %p48 = por %p46, %p47
      %s50 = sadd.s32 %s49, 1
      %p53 = scmp.eq.s32.totalorder %s15, 1
      %p54 = scmp.ne.s32.totalorder %s49, %s51
      %p55 = scmp.eq.s32.totalorder %s15, 0
      %p56 = por %p54, %p55
      %p57 = scmp.ne.s32.totalorder %s49, %s51
      %p58 = scmp.eq.s32.totalorder %s20, 1
      %p59 = por %p57, %p58
      %p60 = scmp.ne.s32.totalorder %s51, %s52
      %p61 = scmp.eq.s32.totalorder %s20, 0
      %p62 = por %p60, %p61
      %p63 = scmp.ne.s32.totalorder %s51, %s52
      %p64 = scmp.eq.s32.totalorder %s21, 1
      %p65 = por %p63, %p64
      %p67 = scmp.ne.s32.totalorder %s52, %s66
      %p68 = scmp.eq.s32.totalorder %s21, 0
      %p69 = por %p67, %p68
      %s71 = sadd.s32 %s70, 1
      %p74 = scmp.eq.s32.totalorder %s15, 1
      %p75 = scmp.ne.s32.totalorder %s70, %s72
      %p76 = scmp.eq.s32.totalorder %s15, 0
      %p77 = por %p75, %p76
      %p78 = scmp.ne.s32.totalorder %s70, %s72
      %p79 = scmp.eq.s32.totalorder %s20, 1
      %p80 = por %p78, %p79
      %p81 = scmp.ne.s32.totalorder %s72, %s73
      %p82 = scmp.eq.s32.totalorder %s20, 0
      %p83 = por %p81, %p82
      %p84 = scmp.ne.s32.totalorder %s72, %s73
      %p85 = scmp.eq.s32.totalorder %s21, 1
      %p86 = por %p84, %p85
      %p88 = scmp.ne.s32.totalorder %s73, %s87
      %p89 = scmp.eq.s32.totalorder %s21, 0
      %p90 = por %p88, %p89
      %s92 = sadd.s32 %s91, 1
      %p95 = scmp.eq.s32.totalorder %s15, 1
      %p96 = scmp.ne.s32.totalorder %s91, %s93
      %p97 = scmp.eq.s32.totalorder %s15, 0
      %p98 = por %p96, %p97
      %p99 = scmp.ne.s32.totalorder %s91, %s93
      %p100 = scmp.eq.s32.totalorder %s20, 1
      %p101 = por %p99, %p100
      %p102 = scmp.ne.s32.totalorder %s93, %s94
      %p103 = scmp.eq.s32.totalorder %s20, 0
      %p104 = por %p102, %p103
      %p105 = scmp.ne.s32.totalorder %s93, %s94
      %p106 = scmp.eq.s32.totalorder %s21, 1
      %p107 = por %p105, %p106
      %p109 = scmp.ne.s32.totalorder %s94, %s108
      %p110 = scmp.eq.s32.totalorder %s21, 0
      %p111 = por %p109, %p110
      %s113 = sadd.s32 %s112, 1
      %p116 = scmp.eq.s32.totalorder %s15, 1
      %p117 = scmp.ne.s32.totalorder %s112, %s114
      %p118 = scmp.eq.s32.totalorder %s15, 0
      %p119 = por %p117, %p118
      %p120 = scmp.ne.s32.totalorder %s112, %s114
      %p121 = scmp.eq.s32.totalorder %s20, 1
      %p122 = por %p120, %p121
      %p123 = scmp.ne.s32.totalorder %s114, %s115
      %p124 = scmp.eq.s32.totalorder %s20, 0
      %p125 = por %p123, %p124
      %p126 = scmp.ne.s32.totalorder %s114, %s115
      %p127 = scmp.eq.s32.totalorder %s21, 1
      %p128 = por %p126, %p127
      %p130 = scmp.ne.s32.totalorder %s115, %s129
      %p131 = scmp.eq.s32.totalorder %s21, 0
      %p132 = por %p130, %p131
      %s134 = sadd.s32 %s133, 1
      %p137 = scmp.eq.s32.totalorder %s15, 1
      %p138 = scmp.ne.s32.totalorder %s133, %s135
      %p139 = scmp.eq.s32.totalorder %s15, 0
      %p140 = por %p138, %p139
      %p141 = scmp.ne.s32.totalorder %s133, %s135
      %p142 = scmp.eq.s32.totalorder %s20, 1
      %p143 = por %p141, %p142
      %p144 = scmp.ne.s32.totalorder %s135, %s136
      %p145 = scmp.eq.s32.totalorder %s20, 0
      %p146 = por %p144, %p145
      %p147 = scmp.ne.s32.totalorder %s135, %s136
      %p148 = scmp.eq.s32.totalorder %s21, 1
      %p149 = por %p147, %p148
      %p151 = scmp.ne.s32.totalorder %s136, %s150
      %p152 = scmp.eq.s32.totalorder %s21, 0
      %p153 = por %p151, %p152
      %s154 = ssub.s32 %s15, %s22
      %p155 = scmp.eq.s32.totalorder %s154, 0
      %s157 = sadd.s32 %s156, 1
      %s158 = scalar_select %p155, %s156, %s157
      %p161 = pneg %p155
      %p162 = scmp.eq.s32.totalorder %s15, 1
      %p163 = por %p161, %p162
      %p164 = scmp.ne.s32.totalorder %s156, %s159
      %p165 = scmp.eq.s32.totalorder %s15, 0
      %p166 = por %p164, %p165
      %p167 = scmp.ne.s32.totalorder %s156, %s159
      %p168 = scmp.eq.s32.totalorder %s20, 1
      %p169 = por %p167, %p168
      %p170 = scmp.ne.s32.totalorder %s159, %s160
      %p171 = scmp.eq.s32.totalorder %s20, 0
      %p172 = por %p170, %p171
      %p173 = scmp.ne.s32.totalorder %s159, %s160
      %p174 = scmp.eq.s32.totalorder %s21, 1
      %p175 = por %p173, %p174
      %p177 = scmp.ne.s32.totalorder %s160, %s176
      %p178 = scmp.eq.s32.totalorder %s21, 0
      %p179 = por %p177, %p178
      %p180 = scmp.le.s32.totalorder 1, %s15
      %p181 = scmp.lt.s32.totalorder %s15, 3
      %p182 = pnand %p180, %p181
      %p183 = pneg %p182
      // Predicated region
      $region9: #{tpu_custom_call.1} parent=5 // pred_check
        _
      $region10: #{tpu_custom_call.1} parent=5 // pred_check_branch
        %185 = sbr.rel (%p182) target = $region12
      $region11: #{tpu_custom_call.1} parent=5 // pred_region
        %s186 = ssub.s32 %s15, 1
        // Predicated region
        $region13: #{tpu_custom_call.1} parent=11 // pred_check
          %p187 = pneg %p62
        $region14: #{tpu_custom_call.1} parent=11 // pred_check_branch
          %189 = sbr.rel (%p187) target = $region16
        $region15: #{tpu_custom_call.1} parent=11 // pred_region
          _
        $region16: #{tpu_custom_call.1} parent=11 // pred_fallthru
          _
        // Predicated region
        $region17: #{tpu_custom_call.1} parent=11 // pred_check
          %p190 = pneg %p83
        $region18: #{tpu_custom_call.1} parent=11 // pred_check_branch
          %192 = sbr.rel (%p190) target = $region20
        $region19: #{tpu_custom_call.1} parent=11 // pred_region
          _
        $region20: #{tpu_custom_call.1} parent=11 // pred_fallthru
          _
        // Predicated region
        $region21: #{tpu_custom_call.1} parent=11 // pred_check
          %p193 = pneg %p104
        $region22: #{tpu_custom_call.1} parent=11 // pred_check_branch
          %195 = sbr.rel (%p193) target = $region24
        $region23: #{tpu_custom_call.1} parent=11 // pred_region
          _
        $region24: #{tpu_custom_call.1} parent=11 // pred_fallthru
          _
        // Predicated region
        $region25: #{tpu_custom_call.1} parent=11 // pred_check
          %p196 = pneg %p125
        $region26: #{tpu_custom_call.1} parent=11 // pred_check_branch
          %198 = sbr.rel (%p196) target = $region28
        $region27: #{tpu_custom_call.1} parent=11 // pred_region
          _
        $region28: #{tpu_custom_call.1} parent=11 // pred_fallthru
          _
        // Predicated region
        $region29: #{tpu_custom_call.1} parent=11 // pred_check
          %p199 = pneg %p146
        $region30: #{tpu_custom_call.1} parent=11 // pred_check_branch
          %201 = sbr.rel (%p199) target = $region32
        $region31: #{tpu_custom_call.1} parent=11 // pred_region
          _
        $region32: #{tpu_custom_call.1} parent=11 // pred_fallthru
          _
      $region12: #{tpu_custom_call.1} parent=5 // pred_fallthru
        _
      %p202 = scmp.lt.s32.totalorder %s15, 2
      // Predicated region
      $region33: #{tpu_custom_call.1} parent=5 // pred_check
        %p203 = pneg %p202
      $region34: #{tpu_custom_call.1} parent=5 // pred_check_branch
        %205 = sbr.rel (%p203) target = $region36
      $region35: #{tpu_custom_call.1} parent=5 // pred_region
        // Predicated region
        $region37: #{tpu_custom_call.1} parent=35 // pred_check
          %p206 = pneg %p35
        $region38: #{tpu_custom_call.1} parent=35 // pred_check_branch
          %208 = sbr.rel (%p206) target = $region40
        $region39: #{tpu_custom_call.1} parent=35 // pred_region
          %s209 = smul.u32 16, %s15
          %p210 = scmp.lt.s32.totalorder %s209, 31
          %s211 = scalar_select %p210, %s209, 31
          %s212 = smul.addr %s211, 2
          %s213 = smul.addr %s212, 4
          %s214 = scalar_lea.vmem %s0, %s213
          %s215 = smul.u32 16, %s15
        $region40: #{tpu_custom_call.1} parent=35 // pred_fallthru
          _
      $region36: #{tpu_custom_call.1} parent=5 // pred_fallthru
        _
      %p216 = scmp.le.s32.totalorder 1, %s15
      %p217 = scmp.lt.s32.totalorder %s15, 3
      %p218 = pnand %p216, %p217
      %p219 = pneg %p218
      // Predicated region
      $region41: #{tpu_custom_call.1} parent=5 // pred_check
        _
      $region42: #{tpu_custom_call.1} parent=5 // pred_check_branch
        %221 = sbr.rel (%p218) target = $region44
      $region43: #{tpu_custom_call.1} parent=5 // pred_region
        %s222 = ssub.s32 %s15, 1
        %s223 = smul.u32 16, %s20
        %p224 = scmp.lt.s32.totalorder %s223, 31
        %s225 = scalar_select %p224, %s223, 31
        %s226 = smul.addr %s225, 2
        %s227 = smul.addr %s226, 4
        %s228 = scalar_lea.vmem %s0, %s227
        %p229 = pneg %p41
        %p230 = pneg %p38
        %p231 = pneg %p62
        %p232 = pneg %p59
        %p233 = pneg %p83
        %p234 = pneg %p80
        %p235 = pneg %p104
        %p236 = pneg %p101
        %p237 = pneg %p125
        %p238 = pneg %p122
        %p239 = pneg %p146
        %p240 = pneg %p143
        %p241 = pneg %p172
        %p242 = pneg %p169
        %s243 = sand.u32 %s159, 1
        %s244 = scalar_lea.sflag [#allocation5], %s243
        %s245 = sand.u32 %s159, 1
        %s246 = smul.addr %s245, 64
        %s247 = scalar_lea.vmem [#allocation4], %s246
        %s248 = smul.u32 16, %s20
        %p249 = scmp.lt.s32.totalorder %s248, 31
        %s250 = scalar_select %p249, %s248, 31
        %s251 = smul.addr %s250, 2
        %s252 = smul.addr %s251, 4
        %s253 = scalar_lea.vmem %s0, %s252
        %s254 = smul.u32 16, %s20
        %s255 = smul.u32 8, %s20
        %v257 = vld [vmem:[%s253] sm:$0xff]
        %v258 = vld [vmem:[%s253 + $0x8] sm:$0xff]
        %v259 = vld [vmem:[%s253 + $0x10] sm:$0xff]
        %v260 = vld [vmem:[%s253 + $0x18] sm:$0xff]
        %v261 = vld [vmem:[%s253 + $0x20] sm:$0xff]
        %v262 = vld [vmem:[%s253 + $0x28] sm:$0xff]
        %v263 = vld [vmem:[%s253 + $0x30] sm:$0xff]
        %v264 = vld [vmem:[%s253 + $0x38] sm:$0xff]
        %v265 = vld [vmem:[%s253 + $0x40] sm:$0xff]
        %v266 = vld [vmem:[%s253 + $0x48] sm:$0xff]
        %v267 = vld [vmem:[%s253 + $0x50] sm:$0xff]
        %v268 = vld [vmem:[%s253 + $0x58] sm:$0xff]
        %v269 = vld [vmem:[%s253 + $0x60] sm:$0xff]
        %v270 = vld [vmem:[%s253 + $0x68] sm:$0xff]
        %v271 = vld [vmem:[%s253 + $0x70] sm:$0xff]
        %v272 = vld [vmem:[%s253 + $0x78] sm:$0xff]
        %v273 = vld [vmem:[%s1] sm:$0xf]
        %v274 = vld [vmem:[%s1 + $0x4] sm:$0xf]
        %v275 = vld [vmem:[%s1 + $0x8] sm:$0xf]
        %v276 = vld [vmem:[%s1 + $0xc] sm:$0xf]
        %v277 = vld [vmem:[%s1 + $0x10] sm:$0xf]
        %v278 = vld [vmem:[%s1 + $0x14] sm:$0xf]
        %v279 = vld [vmem:[%s1 + $0x18] sm:$0xf]
        %v280 = vld [vmem:[%s1 + $0x1c] sm:$0xf]
        %v281 = vld [vmem:[%s1 + $0x20] sm:$0xf]
        %v282 = vld [vmem:[%s1 + $0x24] sm:$0xf]
        %v283 = vld [vmem:[%s1 + $0x28] sm:$0xf]
        %v284 = vld [vmem:[%s1 + $0x2c] sm:$0xf]
        %v285 = vld [vmem:[%s1 + $0x30] sm:$0xf]
        %v286 = vld [vmem:[%s1 + $0x34] sm:$0xf]
        %v287 = vld [vmem:[%s1 + $0x38] sm:$0xf]
        %v288 = vld [vmem:[%s1 + $0x3c] sm:$0xf]
        %v289 = vld [vmem:[%s1 + $0x40] sm:$0xf]
        %v290 = vld [vmem:[%s1 + $0x44] sm:$0xf]
        %v291 = vld [vmem:[%s1 + $0x48] sm:$0xf]
        %v292 = vld [vmem:[%s1 + $0x4c] sm:$0xf]
        %v293 = vld [vmem:[%s1 + $0x50] sm:$0xf]
        %v294 = vld [vmem:[%s1 + $0x54] sm:$0xf]
        %v295 = vld [vmem:[%s1 + $0x58] sm:$0xf]
        %v296 = vld [vmem:[%s1 + $0x5c] sm:$0xf]
        %v297 = vld [vmem:[%s2] sm:$0x1]
        %v298 = vlaneseq
        %v299 = vshrl.u32 %v298, 7
        %v300 = vsub.s32 0, %v299
        %v301 = vrot.slane %v297, %v300
        %v318 = vunpack.c.l.b16 %v257
        %v319 = vunpack.c.h.b16 %v257
        %v320 = vunpack.c.l.b16 %v258
        %v321 = vunpack.c.h.b16 %v258
        %v322 = vunpack.c.l.b16 %v259
        %v323 = vunpack.c.h.b16 %v259
        %v324 = vunpack.c.l.b16 %v260
        %v325 = vunpack.c.h.b16 %v260
        %v326 = vunpack.c.l.b16 %v261
        %v327 = vunpack.c.h.b16 %v261
        %v328 = vunpack.c.l.b16 %v262
        %v329 = vunpack.c.h.b16 %v262
        %v330 = vunpack.c.l.b16 %v263
        %v331 = vunpack.c.h.b16 %v263
        %v332 = vunpack.c.l.b16 %v264
        %v333 = vunpack.c.h.b16 %v264
        %v334 = vunpack.c.l.b16 %v265
        %v335 = vunpack.c.h.b16 %v265
        %v336 = vunpack.c.l.b16 %v266
        %v337 = vunpack.c.h.b16 %v266
        %v338 = vunpack.c.l.b16 %v267
        %v339 = vunpack.c.h.b16 %v267
        %v340 = vunpack.c.l.b16 %v268
        %v341 = vunpack.c.h.b16 %v268
        %v342 = vunpack.c.l.b16 %v269
        %v343 = vunpack.c.h.b16 %v269
        %v344 = vunpack.c.l.b16 %v270
        %v345 = vunpack.c.h.b16 %v270
        %v346 = vunpack.c.l.b16 %v271
        %v347 = vunpack.c.h.b16 %v271
        %v348 = vunpack.c.l.b16 %v272
        %v349 = vunpack.c.h.b16 %v272
        %v350 = vpack.c.b16 %v320, %v318
        %v351 = vpack.c.b16 %v321, %v319
        %v352 = vpack.c.b16 %v324, %v322
        %v353 = vpack.c.b16 %v325, %v323
        %v354 = vpack.c.b16 %v328, %v326
        %v355 = vpack.c.b16 %v329, %v327
        %v356 = vpack.c.b16 %v332, %v330
        %v357 = vpack.c.b16 %v333, %v331
        %v358 = vpack.c.b16 %v336, %v334
        %v359 = vpack.c.b16 %v337, %v335
        %v360 = vpack.c.b16 %v340, %v338
        %v361 = vpack.c.b16 %v341, %v339
        %v362 = vpack.c.b16 %v344, %v342
        %v363 = vpack.c.b16 %v345, %v343
        %v364 = vpack.c.b16 %v348, %v346
        %v365 = vpack.c.b16 %v349, %v347
        %v398 = vunpack.c.l.b16 %v273
        %v399 = vunpack.c.l.b16 %v274
        %v400 = vunpack.c.l.b16 %v275
        %v401 = vunpack.c.l.b16 %v276
        %v402 = vunpack.c.l.b16 %v277
        %v403 = vunpack.c.l.b16 %v278
        %v404 = vunpack.c.l.b16 %v279
        %v405 = vunpack.c.l.b16 %v280
        %v406 = vunpack.c.l.b16 %v281
        %v407 = vunpack.c.l.b16 %v282
        %v408 = vunpack.c.l.b16 %v283
        %v409 = vunpack.c.l.b16 %v284
        %v410 = vunpack.c.l.b16 %v285
        %v411 = vunpack.c.l.b16 %v286
        %v412 = vunpack.c.l.b16 %v287
        %v413 = vunpack.c.l.b16 %v288
        %v414 = vunpack.c.l.b16 %v289
        %v415 = vunpack.c.l.b16 %v290
        %v416 = vunpack.c.l.b16 %v291
        %v417 = vunpack.c.l.b16 %v292
        %v418 = vunpack.c.l.b16 %v293
        %v419 = vunpack.c.l.b16 %v294
        %v420 = vunpack.c.l.b16 %v295
        %v421 = vunpack.c.l.b16 %v296
        %v422 = vpack.c.b16 %v399, %v398
        %v423 = vpack.c.b16 %v401, %v400
        %v424 = vpack.c.b16 %v403, %v402
        %v425 = vpack.c.b16 %v405, %v404
        %v426 = vpack.c.b16 %v407, %v406
        %v427 = vpack.c.b16 %v409, %v408
        %v428 = vpack.c.b16 %v411, %v410
        %v429 = vpack.c.b16 %v413, %v412
        %v430 = vpack.c.b16 %v415, %v414
        %v431 = vpack.c.b16 %v417, %v416
        %v432 = vpack.c.b16 %v419, %v418
        %v433 = vpack.c.b16 %v421, %v420
        %vm446 = vcmask 523264
        %v448 = vsel %vm446, %v351, 0
        %v451 = vsel %vm446, %v353, 0
        %v454 = vsel %vm446, %v355, 0
        %v457 = vsel %vm446, %v357, 0
        %v460 = vsel %vm446, %v359, 0
        %v463 = vsel %vm446, %v361, 0
        %v466 = vsel %vm446, %v363, 0
        %v469 = vsel %vm446, %v365, 0
        %471 = vmatprep.subr.bf16.mxu0 0
        %472 = vmatpush1.bf16.msra.mxu0 %v422
        %473 = vmatprep.subr.bf16.mxu0 0
        %474 = vmatpush1.bf16.msra.mxu0 %v423
        %475 = vmatprep.subr.bf16.mxu0 0
        %476 = vmatpush1.bf16.msra.mxu0 %v424
        %477 = vmatprep.subr.bf16.mxu0 0
        %478 = vmatpush1.bf16.msra.mxu0 %v425
        %479 = vmatprep.subr.bf16.mxu0 0
        %480 = vmatpush1.bf16.msra.mxu0 %v426
        %481 = vmatprep.subr.bf16.mxu0 0
        %482 = vmatpush1.bf16.msra.mxu0 %v427
        %483 = vmatprep.subr.bf16.mxu0 0
        %484 = vmatpush1.bf16.msra.mxu0 %v428
        %485 = vmatprep.subr.bf16.mxu0 0
        %486 = vmatpush1.bf16.msra.mxu0 %v429
        %487 = vmatprep.subr.bf16.mxu0 0
        %488 = vmatpush1.bf16.msra.mxu0 %v430
        %489 = vmatprep.subr.bf16.mxu0 0
        %490 = vmatpush1.bf16.msra.mxu0 %v431
        %491 = vmatprep.subr.bf16.mxu0 0
        %492 = vmatpush1.bf16.msra.mxu0 %v432
        %493 = vmatprep.subr.bf16.mxu0 0
        %494 = vmatpush1.bf16.msra.mxu0 %v433
        %495 = vmatprep.subr.bf16.mxu0 0
        %496 = vmatpush1.bf16.msra.mxu0 0
        %497 = vmatprep.subr.bf16.mxu0 0
        %498 = vmatpush1.bf16.msra.mxu0 0
        %499 = vmatprep.subr.bf16.mxu0 0
        %500 = vmatpush1.bf16.msra.mxu0 0
        %501 = vmatprep.subr.bf16.mxu0 0
        %502 = vmatpush1.bf16.msra.mxu0 0
        %503 = vmatprep.mubr.bf16.mxu0 %v448
        %504 = vmatmul.mubr.bf16.gmra.mrb[0].mxu0 %v350
        %v505 = vpop.f32.mrb[0].mxu0
        %v506 = vadd.f32 %v301, %v505
        %v507 = vpop.f32.mrb[0].mxu0
        %v508 = vpop.f32.mrb[0].mxu0
        %v509 = vadd.f32 %v301, %v508
        %v510 = vpop.f32.mrb[0].mxu0
        %511 = vmatprep.mubr.bf16.mxu0 %v451
        %512 = vmatmul.mubr.bf16.gmra.mrb[0].mxu0 %v352
        %v513 = vpop.f32.mrb[0].mxu0
        %v514 = vadd.f32 %v301, %v513
        %v515 = vpop.f32.mrb[0].mxu0
        %v516 = vpop.f32.mrb[0].mxu0
        %v517 = vadd.f32 %v301, %v516
        %v518 = vpop.f32.mrb[0].mxu0
        %519 = vmatprep.mubr.bf16.mxu0 %v454
        %520 = vmatmul.mubr.bf16.gmra.mrb[0].mxu0 %v354
        %v521 = vpop.f32.mrb[0].mxu0
        %v522 = vadd.f32 %v301, %v521
        %v523 = vpop.f32.mrb[0].mxu0
        %v524 = vpop.f32.mrb[0].mxu0
        %v525 = vadd.f32 %v301, %v524
        %v526 = vpop.f32.mrb[0].mxu0
        %527 = vmatprep.mubr.bf16.mxu0 %v457
        %528 = vmatmul.mubr.bf16.gmra.mrb[0].mxu0 %v356
        %v529 = vpop.f32.mrb[0].mxu0
        %v530 = vadd.f32 %v301, %v529
        %v531 = vpop.f32.mrb[0].mxu0
        %v532 = vpop.f32.mrb[0].mxu0
        %v533 = vadd.f32 %v301, %v532
        %v534 = vpop.f32.mrb[0].mxu0
        %535 = vmatprep.mubr.bf16.mxu0 %v460
        %536 = vmatmul.mubr.bf16.gmra.mrb[0].mxu0 %v358
        %v537 = vpop.f32.mrb[0].mxu0
        %v538 = vadd.f32 %v301, %v537
        %v539 = vpop.f32.mrb[0].mxu0
        %v540 = vpop.f32.mrb[0].mxu0
        %v541 = vadd.f32 %v301, %v540
        %v542 = vpop.f32.mrb[0].mxu0
        %543 = vmatprep.mubr.bf16.mxu0 %v463
        %544 = vmatmul.mubr.bf16.gmra.mrb[0].mxu0 %v360
        %v545 = vpop.f32.mrb[0].mxu0
        %v546 = vadd.f32 %v301, %v545
        %v547 = vpop.f32.mrb[0].mxu0
        %v548 = vpop.f32.mrb[0].mxu0
        %v549 = vadd.f32 %v301, %v548
        %v550 = vpop.f32.mrb[0].mxu0
        %551 = vmatprep.mubr.bf16.mxu0 %v466
        %552 = vmatmul.mubr.bf16.gmra.mrb[0].mxu0 %v362
        %v553 = vpop.f32.mrb[0].mxu0
        %v554 = vadd.f32 %v301, %v553
        %v555 = vpop.f32.mrb[0].mxu0
        %v556 = vpop.f32.mrb[0].mxu0
        %v557 = vadd.f32 %v301, %v556
        %v558 = vpop.f32.mrb[0].mxu0
        %559 = vmatprep.mubr.bf16.mxu0 %v469
        %560 = vmatmul.mubr.bf16.gmra.mrb[0].mxu0 %v364
        %v561 = vpop.f32.mrb[0].mxu0
        %v562 = vadd.f32 %v301, %v561
        %v563 = vpop.f32.mrb[0].mxu0
        %v564 = vpop.f32.mrb[0].mxu0
        %v565 = vadd.f32 %v301, %v564
        %v566 = vpop.f32.mrb[0].mxu0
        %567 = vdwg.mxu0
        %vm568 = vcmp.gt.f32.partialorder %v506, 0.0
        %vm569 = vcmp.gt.f32.partialorder %v509, 0.0
        %vm570 = vcmp.gt.f32.partialorder %v514, 0.0
        %vm571 = vcmp.gt.f32.partialorder %v517, 0.0
        %vm572 = vcmp.gt.f32.partialorder %v522, 0.0
        %vm573 = vcmp.gt.f32.partialorder %v525, 0.0
        %vm574 = vcmp.gt.f32.partialorder %v530, 0.0
        %vm575 = vcmp.gt.f32.partialorder %v533, 0.0
        %vm576 = vcmp.gt.f32.partialorder %v538, 0.0
        %vm577 = vcmp.gt.f32.partialorder %v541, 0.0
        %vm578 = vcmp.gt.f32.partialorder %v546, 0.0
        %vm579 = vcmp.gt.f32.partialorder %v549, 0.0
        %vm580 = vcmp.gt.f32.partialorder %v554, 0.0
        %vm581 = vcmp.gt.f32.partialorder %v557, 0.0
        %vm582 = vcmp.gt.f32.partialorder %v562, 0.0
        %vm583 = vcmp.gt.f32.partialorder %v565, 0.0
        %v584 = vmul.f32 %v506, 1.442695
        %v585 = vpow.pop %v584
        %v586 = vmul.f32 %v509, 1.442695
        %v587 = vpow.pop %v586
        %v588 = vmul.f32 %v514, 1.442695
        %v589 = vpow.pop %v588
        %v590 = vmul.f32 %v517, 1.442695
        %v591 = vpow.pop %v590
        %v592 = vmul.f32 %v522, 1.442695
        %v593 = vpow.pop %v592
        %v594 = vmul.f32 %v525, 1.442695
        %v595 = vpow.pop %v594
        %v596 = vmul.f32 %v530, 1.442695
        %v597 = vpow.pop %v596
        %v598 = vmul.f32 %v533, 1.442695
        %v599 = vpow.pop %v598
        %v600 = vmul.f32 %v538, 1.442695
        %v601 = vpow.pop %v600
        %v602 = vmul.f32 %v541, 1.442695
        %v603 = vpow.pop %v602
        %v604 = vmul.f32 %v546, 1.442695
        %v605 = vpow.pop %v604
        %v606 = vmul.f32 %v549, 1.442695
        %v607 = vpow.pop %v606
        %v608 = vmul.f32 %v554, 1.442695
        %v609 = vpow.pop %v608
        %v610 = vmul.f32 %v557, 1.442695
        %v611 = vpow.pop %v610
        %v612 = vmul.f32 %v562, 1.442695
        %v613 = vpow.pop %v612
        %v614 = vmul.f32 %v565, 1.442695
        %v615 = vpow.pop %v614
        %v616 = vsub.f32 %v585, 1.0
        %v617 = vsub.f32 %v587, 1.0
        %v618 = vsub.f32 %v589, 1.0
        %v619 = vsub.f32 %v591, 1.0
        %v620 = vsub.f32 %v593, 1.0
        %v621 = vsub.f32 %v595, 1.0
        %v622 = vsub.f32 %v597, 1.0
        %v623 = vsub.f32 %v599, 1.0
        %v624 = vsub.f32 %v601, 1.0
        %v625 = vsub.f32 %v603, 1.0
        %v626 = vsub.f32 %v605, 1.0
        %v627 = vsub.f32 %v607, 1.0
        %v628 = vsub.f32 %v609, 1.0
        %v629 = vsub.f32 %v611, 1.0
        %v630 = vsub.f32 %v613, 1.0
        %v631 = vsub.f32 %v615, 1.0
        %v632 = vmul.f32 %v616, 1.6732632
        %v633 = vmul.f32 %v617, 1.6732632
        %v634 = vmul.f32 %v618, 1.6732632
        %v635 = vmul.f32 %v619, 1.6732632
        %v636 = vmul.f32 %v620, 1.6732632
        %v637 = vmul.f32 %v621, 1.6732632
        %v638 = vmul.f32 %v622, 1.6732632
        %v639 = vmul.f32 %v623, 1.6732632
        %v640 = vmul.f32 %v624, 1.6732632
        %v641 = vmul.f32 %v625, 1.6732632
        %v642 = vmul.f32 %v626, 1.6732632
        %v643 = vmul.f32 %v627, 1.6732632
        %v644 = vmul.f32 %v628, 1.6732632
        %v645 = vmul.f32 %v629, 1.6732632
        %v646 = vmul.f32 %v630, 1.6732632
        %v647 = vmul.f32 %v631, 1.6732632
        %v648 = vsel %vm568, %v506, %v632
        %v649 = vsel %vm569, %v509, %v633
        %v650 = vsel %vm570, %v514, %v634
        %v651 = vsel %vm571, %v517, %v635
        %v652 = vsel %vm572, %v522, %v636
        %v653 = vsel %vm573, %v525, %v637
        %v654 = vsel %vm574, %v530, %v638
        %v655 = vsel %vm575, %v533, %v639
        %v656 = vsel %vm576, %v538, %v640
        %v657 = vsel %vm577, %v541, %v641
        %v658 = vsel %vm578, %v546, %v642
        %v659 = vsel %vm579, %v549, %v643
        %v660 = vsel %vm580, %v554, %v644
        %v661 = vsel %vm581, %v557, %v645
        %v662 = vsel %vm582, %v562, %v646
        %v663 = vsel %vm583, %v565, %v647
        %v664 = vmul.f32 %v648, 1.050701
        %v665 = vmul.f32 %v649, 1.050701
        %v666 = vmul.f32 %v650, 1.050701
        %v667 = vmul.f32 %v651, 1.050701
        %v668 = vmul.f32 %v652, 1.050701
        %v669 = vmul.f32 %v653, 1.050701
        %v670 = vmul.f32 %v654, 1.050701
        %v671 = vmul.f32 %v655, 1.050701
        %v672 = vmul.f32 %v656, 1.050701
        %v673 = vmul.f32 %v657, 1.050701
        %v674 = vmul.f32 %v658, 1.050701
        %v675 = vmul.f32 %v659, 1.050701
        %v676 = vmul.f32 %v660, 1.050701
        %v677 = vmul.f32 %v661, 1.050701
        %v678 = vmul.f32 %v662, 1.050701
        %v679 = vmul.f32 %v663, 1.050701
        %v680 = vld [vmem:[%s2 + $0x1] sm:$0x1]
        %v681 = vlaneseq
        %v682 = vshrl.u32 %v681, 7
        %v683 = vsub.s32 0, %v682
        %v684 = vrot.slane %v680, %v683
        %v685 = vmul.f32 %v664, %v684
        %v686 = vmul.f32 %v665, %v684
        %v687 = vmul.f32 %v666, %v684
        %v688 = vmul.f32 %v667, %v684
        %v689 = vmul.f32 %v668, %v684
        %v690 = vmul.f32 %v669, %v684
        %v691 = vmul.f32 %v670, %v684
        %v692 = vmul.f32 %v671, %v684
        %v693 = vmul.f32 %v672, %v684
        %v694 = vmul.f32 %v673, %v684
        %v695 = vmul.f32 %v674, %v684
        %v696 = vmul.f32 %v675, %v684
        %v697 = vmul.f32 %v676, %v684
        %v698 = vmul.f32 %v677, %v684
        %v699 = vmul.f32 %v678, %v684
        %v700 = vmul.f32 %v679, %v684
        %v701 = vld [vmem:[%s2 + $0x2] sm:$0x1]
        %v702 = vlaneseq
        %v703 = vshrl.u32 %v702, 7
        %v704 = vsub.s32 0, %v703
        %v705 = vrot.slane %v701, %v704
        %v706 = vadd.f32 %v685, %v705
        %v707 = vadd.f32 %v686, %v705
        %v708 = vadd.f32 %v687, %v705
        %v709 = vadd.f32 %v688, %v705
        %v710 = vadd.f32 %v689, %v705
        %v711 = vadd.f32 %v690, %v705
        %v712 = vadd.f32 %v691, %v705
        %v713 = vadd.f32 %v692, %v705
        %v714 = vadd.f32 %v693, %v705
        %v715 = vadd.f32 %v694, %v705
        %v716 = vadd.f32 %v695, %v705
        %v717 = vadd.f32 %v696, %v705
        %v718 = vadd.f32 %v697, %v705
        %v719 = vadd.f32 %v698, %v705
        %v720 = vadd.f32 %v699, %v705
        %v721 = vadd.f32 %v700, %v705
        %vm722 = vcmask 1040384
        %vm723 = vsmask.f32 256
        %vm724 = vmand %vm722, %vm723
        %v725 = vld [vmem:[#allocation2] sm:$0x1]
        %v726 = vsel %vm724, 0, %v725
        %727 = vst [vmem:[#allocation2] sm:$0x1] %v726
        %vm728 = vsmask.f32 7938
        %vm729 = vmand %vm722, %vm728
        %v730 = vld [vmem:[#allocation2 + $0x40] sm:$0x1]
        %v731 = vsel %vm729, 0, %v730
        %732 = vst [vmem:[#allocation2 + $0x40] sm:$0x1] %v731
        %v733 = vpack.c.bf16 %v707, %v706
        %v734 = vpack.c.bf16 %v709, %v708
        %v735 = vpack.c.bf16 %v711, %v710
        %v736 = vpack.c.bf16 %v713, %v712
        %v737 = vpack.c.bf16 %v715, %v714
        %v738 = vpack.c.bf16 %v717, %v716
        %v739 = vpack.c.bf16 %v719, %v718
        %v740 = vpack.c.bf16 %v721, %v720
        %v749 = vunpack.c.l.b16 %v733
        %v750 = vunpack.c.h.b16 %v733
        %v751 = vunpack.c.l.b16 %v734
        %v752 = vunpack.c.h.b16 %v734
        %v753 = vunpack.c.l.b16 %v735
        %v754 = vunpack.c.h.b16 %v735
        %v755 = vunpack.c.l.b16 %v736
        %v756 = vunpack.c.h.b16 %v736
        %v757 = vunpack.c.l.b16 %v737
        %v758 = vunpack.c.h.b16 %v737
        %v759 = vunpack.c.l.b16 %v738
        %v760 = vunpack.c.h.b16 %v738
        %v761 = vunpack.c.l.b16 %v739
        %v762 = vunpack.c.h.b16 %v739
        %v763 = vunpack.c.l.b16 %v740
        %v764 = vunpack.c.h.b16 %v740
        %v765 = vpack.c.b16 %v749, %v749
        %v766 = vpack.c.b16 %v750, %v750
        %v767 = vpack.c.b16 %v751, %v751
        %v768 = vpack.c.b16 %v752, %v752
        %v769 = vpack.c.b16 %v753, %v753
        %v770 = vpack.c.b16 %v754, %v754
        %v771 = vpack.c.b16 %v755, %v755
        %v772 = vpack.c.b16 %v756, %v756
        %v773 = vpack.c.b16 %v757, %v757
        %v774 = vpack.c.b16 %v758, %v758
        %v775 = vpack.c.b16 %v759, %v759
        %v776 = vpack.c.b16 %v760, %v760
        %v777 = vpack.c.b16 %v761, %v761
        %v778 = vpack.c.b16 %v762, %v762
        %v779 = vpack.c.b16 %v763, %v763
        %v780 = vpack.c.b16 %v764, %v764
        %vm781 = vsmask.f32 4368
        %vm782 = vmor %vm723, %vm781
        %v784 = vshrl.u32 %v765, 16
        %v786 = vrot.slane %v784, 7
        %v787 = vshll.u32 %v765, 16
        %v789 = vor.u32 %v786, %v787
        %v790 = vrot.slane %v786, 4
        %v792 = vshrl.u32 %v766, 16
        %v794 = vrot.slane %v792, 7
        %v795 = vshll.u32 %v766, 16
        %v797 = vor.u32 %v794, %v795
        %v798 = vsel %vm782, %v790, %v797
        %v799 = vrot.slane %v794, 4
        %v801 = vshrl.u32 %v767, 16
        %v803 = vrot.slane %v801, 7
        %v804 = vshll.u32 %v767, 16
        %v806 = vor.u32 %v803, %v804
        %v807 = vsel %vm782, %v799, %v806
        %v808 = vrot.slane %v803, 4
        %v810 = vshrl.u32 %v768, 16
        %v812 = vrot.slane %v810, 7
        %v813 = vshll.u32 %v768, 16
        %v815 = vor.u32 %v812, %v813
        %v816 = vsel %vm782, %v808, %v815
        %v817 = vrot.slane %v812, 4
        %v819 = vshrl.u32 %v769, 16
        %v821 = vrot.slane %v819, 7
        %v822 = vshll.u32 %v769, 16
        %v824 = vor.u32 %v821, %v822
        %v825 = vsel %vm782, %v817, %v824
        %v826 = vrot.slane %v821, 4
        %v828 = vshrl.u32 %v770, 16
        %v830 = vrot.slane %v828, 7
        %v831 = vshll.u32 %v770, 16
        %v833 = vor.u32 %v830, %v831
        %v834 = vsel %vm782, %v826, %v833
        %v835 = vrot.slane %v830, 4
        %v837 = vshrl.u32 %v771, 16
        %v839 = vrot.slane %v837, 7
        %v840 = vshll.u32 %v771, 16
        %v842 = vor.u32 %v839, %v840
        %v843 = vsel %vm782, %v835, %v842
        %v844 = vrot.slane %v839, 4
        %v846 = vshrl.u32 %v772, 16
        %v848 = vrot.slane %v846, 7
        %v849 = vshll.u32 %v772, 16
        %v851 = vor.u32 %v848, %v849
        %v852 = vsel %vm782, %v844, %v851
        %v853 = vrot.slane %v848, 4
        %v855 = vshrl.u32 %v773, 16
        %v857 = vrot.slane %v855, 7
        %v858 = vshll.u32 %v773, 16
        %v860 = vor.u32 %v857, %v858
        %v861 = vsel %vm782, %v853, %v860
        %v862 = vrot.slane %v857, 4
        %v864 = vshrl.u32 %v774, 16
        %v866 = vrot.slane %v864, 7
        %v867 = vshll.u32 %v774, 16
        %v869 = vor.u32 %v866, %v867
        %v870 = vsel %vm782, %v862, %v869
        %v871 = vrot.slane %v866, 4
        %v873 = vshrl.u32 %v775, 16
        %v875 = vrot.slane %v873, 7
        %v876 = vshll.u32 %v775, 16
        %v878 = vor.u32 %v875, %v876
        %v879 = vsel %vm782, %v871, %v878
        %v880 = vrot.slane %v875, 4
        %v882 = vshrl.u32 %v776, 16
        %v884 = vrot.slane %v882, 7
        %v885 = vshll.u32 %v776, 16
        %v887 = vor.u32 %v884, %v885
        %v888 = vsel %vm782, %v880, %v887
        %v889 = vrot.slane %v884, 4
        %v891 = vshrl.u32 %v777, 16
        %v893 = vrot.slane %v891, 7
        %v894 = vshll.u32 %v777, 16
        %v896 = vor.u32 %v893, %v894
        %v897 = vsel %vm782, %v889, %v896
        %v898 = vrot.slane %v893, 4
        %v900 = vshrl.u32 %v778, 16
        %v902 = vrot.slane %v900, 7
        %v903 = vshll.u32 %v778, 16
        %v905 = vor.u32 %v902, %v903
        %v906 = vsel %vm782, %v898, %v905
        %v907 = vrot.slane %v902, 4
        %v909 = vshrl.u32 %v779, 16
        %v911 = vrot.slane %v909, 7
        %v912 = vshll.u32 %v779, 16
        %v914 = vor.u32 %v911, %v912
        %v915 = vsel %vm782, %v907, %v914
        %v916 = vrot.slane %v911, 4
        %v918 = vshrl.u32 %v780, 16
        %v920 = vrot.slane %v918, 7
        %v921 = vshll.u32 %v780, 16
        %v923 = vor.u32 %v920, %v921
        %v924 = vsel %vm782, %v916, %v923
        %v925 = vrot.slane %v920, 4
        %vm943 = vcmask 1043456
        %vm944 = vmand %vm943, %vm728
        %v945 = vld [vmem:[#allocation2] sm:$0xf]
        %v946 = vsel %vm944, %v789, %v945
        %947 = vst [vmem:[#allocation2] sm:$0xf] %v946
        %948 = vst [vmem:[#allocation2 + $0x4] sm:$0xf] %v798
        %949 = vst [vmem:[#allocation2 + $0x8] sm:$0xf] %v807
        %950 = vst [vmem:[#allocation2 + $0xc] sm:$0xf] %v816
        %951 = vst [vmem:[#allocation2 + $0x10] sm:$0xf] %v825
        %952 = vst [vmem:[#allocation2 + $0x14] sm:$0xf] %v834
        %953 = vst [vmem:[#allocation2 + $0x18] sm:$0xf] %v843
        %954 = vst [vmem:[#allocation2 + $0x1c] sm:$0xf] %v852
        %955 = vst [vmem:[#allocation2 + $0x20] sm:$0xf] %v861
        %956 = vst [vmem:[#allocation2 + $0x24] sm:$0xf] %v870
        %957 = vst [vmem:[#allocation2 + $0x28] sm:$0xf] %v879
        %958 = vst [vmem:[#allocation2 + $0x2c] sm:$0xf] %v888
        %959 = vst [vmem:[#allocation2 + $0x30] sm:$0xf] %v897
        %960 = vst [vmem:[#allocation2 + $0x34] sm:$0xf] %v906
        %961 = vst [vmem:[#allocation2 + $0x38] sm:$0xf] %v915
        %962 = vst [vmem:[#allocation2 + $0x3c] sm:$0xf] %v924
        %v963 = vld [vmem:[#allocation2 + $0x40] sm:$0x1]
        %v964 = vsel %vm724, %v925, %v963
        %965 = vst [vmem:[#allocation2 + $0x40] sm:$0x1] %v964
        %v966 = vld [vmem:[#allocation2] sm:$0xf]
        %v967 = vld [vmem:[#allocation2 + $0x4] sm:$0xf]
        %v968 = vld [vmem:[#allocation2 + $0x8] sm:$0xf]
        %v969 = vld [vmem:[#allocation2 + $0xc] sm:$0xf]
        %v970 = vld [vmem:[#allocation2 + $0x10] sm:$0xf]
        %v971 = vld [vmem:[#allocation2 + $0x14] sm:$0xf]
        %v972 = vld [vmem:[#allocation2 + $0x18] sm:$0xf]
        %v973 = vld [vmem:[#allocation2 + $0x1c] sm:$0xf]
        %v974 = vld [vmem:[#allocation2 + $0x20] sm:$0xf]
        %v975 = vld [vmem:[#allocation2 + $0x24] sm:$0xf]
        %v976 = vld [vmem:[#allocation2 + $0x28] sm:$0xf]
        %v977 = vld [vmem:[#allocation2 + $0x2c] sm:$0xf]
        %v978 = vld [vmem:[#allocation2 + $0x30] sm:$0xf]
        %v979 = vld [vmem:[#allocation2 + $0x34] sm:$0xf]
        %v980 = vld [vmem:[#allocation2 + $0x38] sm:$0xf]
        %v981 = vld [vmem:[#allocation2 + $0x3c] sm:$0xf]
        %v982 = vld [vmem:[%s5] sm:$0xf]
        %v983 = vld [vmem:[%s5 + $0x4] sm:$0xf]
        %v984 = vld [vmem:[%s5 + $0x8] sm:$0xf]
        %v985 = vld [vmem:[%s5 + $0xc] sm:$0xf]
        %v986 = vld [vmem:[%s5 + $0x10] sm:$0xf]
        %v987 = vld [vmem:[%s5 + $0x14] sm:$0xf]
        %v988 = vld [vmem:[%s5 + $0x18] sm:$0xf]
        %v989 = vld [vmem:[%s5 + $0x1c] sm:$0xf]
        %v990 = vld [vmem:[%s5 + $0x20] sm:$0xf]
        %v991 = vld [vmem:[%s5 + $0x24] sm:$0xf]
        %v992 = vld [vmem:[%s5 + $0x28] sm:$0xf]
        %v993 = vld [vmem:[%s5 + $0x2c] sm:$0xf]
        %v994 = vld [vmem:[%s5 + $0x30] sm:$0xf]
        %v995 = vld [vmem:[%s5 + $0x34] sm:$0xf]
        %v996 = vld [vmem:[%s5 + $0x38] sm:$0xf]
        %v997 = vld [vmem:[%s5 + $0x3c] sm:$0xf]
        %999 = vset.pattern.permute.xlu0 0
        %1000 = vperm.xlu0 %999, %v982
        %v1001 = vpop.permute.xlu0 %1000
        %v1004 = vunpack.c.l.s4 839922192
        %v1005 = vunpack.c.0.s8 %v1004
        %v1006 = vlaneseq
        %v1007 = vshrl.u32 %v1006, 7
        %v1008 = vsub.s32 %v1005, %v1007
        %v1009 = vrot.slane %v1001, %v1008
        %1011 = vset.pattern.permute.xlu0 0
        %1012 = vperm.xlu0 %1011, %v983
        %v1013 = vpop.permute.xlu0 %1012
        %v1016 = vunpack.c.l.s4 839922192
        %v1017 = vunpack.c.0.s8 %v1016
        %v1018 = vlaneseq
        %v1019 = vshrl.u32 %v1018, 7
        %v1020 = vsub.s32 %v1017, %v1019
        %v1021 = vrot.slane %v1013, %v1020
        %1023 = vset.pattern.permute.xlu0 0
        %1024 = vperm.xlu0 %1023, %v984
        %v1025 = vpop.permute.xlu0 %1024
        %v1028 = vunpack.c.l.s4 839922192
        %v1029 = vunpack.c.0.s8 %v1028
        %v1030 = vlaneseq
        %v1031 = vshrl.u32 %v1030, 7
        %v1032 = vsub.s32 %v1029, %v1031
        %v1033 = vrot.slane %v1025, %v1032
        %1035 = vset.pattern.permute.xlu0 0
        %1036 = vperm.xlu0 %1035, %v985
        %v1037 = vpop.permute.xlu0 %1036
        %v1040 = vunpack.c.l.s4 839922192
        %v1041 = vunpack.c.0.s8 %v1040
        %v1042 = vlaneseq
        %v1043 = vshrl.u32 %v1042, 7
        %v1044 = vsub.s32 %v1041, %v1043
        %v1045 = vrot.slane %v1037, %v1044
        %1047 = vset.pattern.permute.xlu0 0
        %1048 = vperm.xlu0 %1047, %v986
        %v1049 = vpop.permute.xlu0 %1048
        %v1052 = vunpack.c.l.s4 839922192
        %v1053 = vunpack.c.0.s8 %v1052
        %v1054 = vlaneseq
        %v1055 = vshrl.u32 %v1054, 7
        %v1056 = vsub.s32 %v1053, %v1055
        %v1057 = vrot.slane %v1049, %v1056
        %1059 = vset.pattern.permute.xlu0 0
        %1060 = vperm.xlu0 %1059, %v987
        %v1061 = vpop.permute.xlu0 %1060
        %v1064 = vunpack.c.l.s4 839922192
        %v1065 = vunpack.c.0.s8 %v1064
        %v1066 = vlaneseq
        %v1067 = vshrl.u32 %v1066, 7
        %v1068 = vsub.s32 %v1065, %v1067
        %v1069 = vrot.slane %v1061, %v1068
        %1071 = vset.pattern.permute.xlu0 0
        %1072 = vperm.xlu0 %1071, %v988
        %v1073 = vpop.permute.xlu0 %1072
        %v1076 = vunpack.c.l.s4 839922192
        %v1077 = vunpack.c.0.s8 %v1076
        %v1078 = vlaneseq
        %v1079 = vshrl.u32 %v1078, 7
        %v1080 = vsub.s32 %v1077, %v1079
        %v1081 = vrot.slane %v1073, %v1080
        %1083 = vset.pattern.permute.xlu0 0
        %1084 = vperm.xlu0 %1083, %v989
        %v1085 = vpop.permute.xlu0 %1084
        %v1088 = vunpack.c.l.s4 839922192
        %v1089 = vunpack.c.0.s8 %v1088
        %v1090 = vlaneseq
        %v1091 = vshrl.u32 %v1090, 7
        %v1092 = vsub.s32 %v1089, %v1091
        %v1093 = vrot.slane %v1085, %v1092
        %1095 = vset.pattern.permute.xlu0 0
        %1096 = vperm.xlu0 %1095, %v990
        %v1097 = vpop.permute.xlu0 %1096
        %v1100 = vunpack.c.l.s4 839922192
        %v1101 = vunpack.c.0.s8 %v1100
        %v1102 = vlaneseq
        %v1103 = vshrl.u32 %v1102, 7
        %v1104 = vsub.s32 %v1101, %v1103
        %v1105 = vrot.slane %v1097, %v1104
        %1107 = vset.pattern.permute.xlu0 0
        %1108 = vperm.xlu0 %1107, %v991
        %v1109 = vpop.permute.xlu0 %1108
        %v1112 = vunpack.c.l.s4 839922192
        %v1113 = vunpack.c.0.s8 %v1112
        %v1114 = vlaneseq
        %v1115 = vshrl.u32 %v1114, 7
        %v1116 = vsub.s32 %v1113, %v1115
        %v1117 = vrot.slane %v1109, %v1116
        %1119 = vset.pattern.permute.xlu0 0
        %1120 = vperm.xlu0 %1119, %v992
        %v1121 = vpop.permute.xlu0 %1120
        %v1124 = vunpack.c.l.s4 839922192
        %v1125 = vunpack.c.0.s8 %v1124
        %v1126 = vlaneseq
        %v1127 = vshrl.u32 %v1126, 7
        %v1128 = vsub.s32 %v1125, %v1127
        %v1129 = vrot.slane %v1121, %v1128
        %1131 = vset.pattern.permute.xlu0 0
        %1132 = vperm.xlu0 %1131, %v993
        %v1133 = vpop.permute.xlu0 %1132
        %v1136 = vunpack.c.l.s4 839922192
        %v1137 = vunpack.c.0.s8 %v1136
        %v1138 = vlaneseq
        %v1139 = vshrl.u32 %v1138, 7
        %v1140 = vsub.s32 %v1137, %v1139
        %v1141 = vrot.slane %v1133, %v1140
        %1143 = vset.pattern.permute.xlu0 0
        %1144 = vperm.xlu0 %1143, %v994
        %v1145 = vpop.permute.xlu0 %1144
        %v1148 = vunpack.c.l.s4 839922192
        %v1149 = vunpack.c.0.s8 %v1148
        %v1150 = vlaneseq
        %v1151 = vshrl.u32 %v1150, 7
        %v1152 = vsub.s32 %v1149, %v1151
        %v1153 = vrot.slane %v1145, %v1152
        %1155 = vset.pattern.permute.xlu0 0
        %1156 = vperm.xlu0 %1155, %v995
        %v1157 = vpop.permute.xlu0 %1156
        %v1160 = vunpack.c.l.s4 839922192
        %v1161 = vunpack.c.0.s8 %v1160
        %v1162 = vlaneseq
        %v1163 = vshrl.u32 %v1162, 7
        %v1164 = vsub.s32 %v1161, %v1163
        %v1165 = vrot.slane %v1157, %v1164
        %1167 = vset.pattern.permute.xlu0 0
        %1168 = vperm.xlu0 %1167, %v996
        %v1169 = vpop.permute.xlu0 %1168
        %v1172 = vunpack.c.l.s4 839922192
        %v1173 = vunpack.c.0.s8 %v1172
        %v1174 = vlaneseq
        %v1175 = vshrl.u32 %v1174, 7
        %v1176 = vsub.s32 %v1173, %v1175
        %v1177 = vrot.slane %v1169, %v1176
        %1179 = vset.pattern.permute.xlu0 0
        %1180 = vperm.xlu0 %1179, %v997
        %v1181 = vpop.permute.xlu0 %1180
        %v1184 = vunpack.c.l.s4 839922192
        %v1185 = vunpack.c.0.s8 %v1184
        %v1186 = vlaneseq
        %v1187 = vshrl.u32 %v1186, 7
        %v1188 = vsub.s32 %v1185, %v1187
        %v1189 = vrot.slane %v1181, %v1188
        %v1190 = vmul.bf16 %v966, %v1009
        %v1191 = vmul.bf16 %v967, %v1021
        %v1192 = vmul.bf16 %v968, %v1033
        %v1193 = vmul.bf16 %v969, %v1045
        %v1194 = vmul.bf16 %v970, %v1057
        %v1195 = vmul.bf16 %v971, %v1069
        %v1196 = vmul.bf16 %v972, %v1081
        %v1197 = vmul.bf16 %v973, %v1093
        %v1198 = vmul.bf16 %v974, %v1105
        %v1199 = vmul.bf16 %v975, %v1117
        %v1200 = vmul.bf16 %v976, %v1129
        %v1201 = vmul.bf16 %v977, %v1141
        %v1202 = vmul.bf16 %v978, %v1153
        %v1203 = vmul.bf16 %v979, %v1165
        %v1204 = vmul.bf16 %v980, %v1177
        %v1205 = vmul.bf16 %v981, %v1189
        %v1206 = vld [vmem:[#allocation2] sm:$0xf]
        %v1207 = vld [vmem:[#allocation2 + $0x4] sm:$0xf]
        %v1208 = vld [vmem:[#allocation2 + $0x8] sm:$0xf]
        %v1209 = vld [vmem:[#allocation2 + $0xc] sm:$0xf]
        %v1210 = vld [vmem:[#allocation2 + $0x10] sm:$0xf]
        %v1211 = vld [vmem:[#allocation2 + $0x14] sm:$0xf]
        %v1212 = vld [vmem:[#allocation2 + $0x18] sm:$0xf]
        %v1213 = vld [vmem:[#allocation2 + $0x1c] sm:$0xf]
        %v1214 = vld [vmem:[#allocation2 + $0x20] sm:$0xf]
        %v1215 = vld [vmem:[#allocation2 + $0x24] sm:$0xf]
        %v1216 = vld [vmem:[#allocation2 + $0x28] sm:$0xf]
        %v1217 = vld [vmem:[#allocation2 + $0x2c] sm:$0xf]
        %v1218 = vld [vmem:[#allocation2 + $0x30] sm:$0xf]
        %v1219 = vld [vmem:[#allocation2 + $0x34] sm:$0xf]
        %v1220 = vld [vmem:[#allocation2 + $0x38] sm:$0xf]
        %v1221 = vld [vmem:[#allocation2 + $0x3c] sm:$0xf]
        %v1222 = vld [vmem:[#allocation2 + $0x40] sm:$0x1]
        %v1223 = vld [vmem:[#allocation2] sm:$0xe]
        %1224 = vset.pattern.permute.xlu0 1
        %1225 = vperm.xlu0 %1224, %v982
        %v1226 = vpop.permute.xlu0 %1225
        %v1229 = vunpack.c.l.s4 839922192
        %v1230 = vunpack.c.0.s8 %v1229
        %v1231 = vlaneseq
        %v1232 = vshrl.u32 %v1231, 7
        %v1233 = vsub.s32 %v1230, %v1232
        %v1234 = vrot.slane %v1226, %v1233
        %1235 = vset.pattern.permute.xlu0 1
        %1236 = vperm.xlu0 %1235, %v983
        %v1237 = vpop.permute.xlu0 %1236
        %v1240 = vunpack.c.l.s4 839922192
        %v1241 = vunpack.c.0.s8 %v1240
        %v1242 = vlaneseq
        %v1243 = vshrl.u32 %v1242, 7
        %v1244 = vsub.s32 %v1241, %v1243
        %v1245 = vrot.slane %v1237, %v1244
        %1246 = vset.pattern.permute.xlu0 1
        %1247 = vperm.xlu0 %1246, %v984
        %v1248 = vpop.permute.xlu0 %1247
        %v1251 = vunpack.c.l.s4 839922192
        %v1252 = vunpack.c.0.s8 %v1251
        %v1253 = vlaneseq
        %v1254 = vshrl.u32 %v1253, 7
        %v1255 = vsub.s32 %v1252, %v1254
        %v1256 = vrot.slane %v1248, %v1255
        %1257 = vset.pattern.permute.xlu0 1
        %1258 = vperm.xlu0 %1257, %v985
        %v1259 = vpop.permute.xlu0 %1258
        %v1262 = vunpack.c.l.s4 839922192
        %v1263 = vunpack.c.0.s8 %v1262
        %v1264 = vlaneseq
        %v1265 = vshrl.u32 %v1264, 7
        %v1266 = vsub.s32 %v1263, %v1265
        %v1267 = vrot.slane %v1259, %v1266
        %1268 = vset.pattern.permute.xlu0 1
        %1269 = vperm.xlu0 %1268, %v986
        %v1270 = vpop.permute.xlu0 %1269
        %v1273 = vunpack.c.l.s4 839922192
        %v1274 = vunpack.c.0.s8 %v1273
        %v1275 = vlaneseq
        %v1276 = vshrl.u32 %v1275, 7
        %v1277 = vsub.s32 %v1274, %v1276
        %v1278 = vrot.slane %v1270, %v1277
        %1279 = vset.pattern.permute.xlu0 1
        %1280 = vperm.xlu0 %1279, %v987
        %v1281 = vpop.permute.xlu0 %1280
        %v1284 = vunpack.c.l.s4 839922192
        %v1285 = vunpack.c.0.s8 %v1284
        %v1286 = vlaneseq
        %v1287 = vshrl.u32 %v1286, 7
        %v1288 = vsub.s32 %v1285, %v1287
        %v1289 = vrot.slane %v1281, %v1288
        %1290 = vset.pattern.permute.xlu0 1
        %1291 = vperm.xlu0 %1290, %v988
        %v1292 = vpop.permute.xlu0 %1291
        %v1295 = vunpack.c.l.s4 839922192
        %v1296 = vunpack.c.0.s8 %v1295
        %v1297 = vlaneseq
        %v1298 = vshrl.u32 %v1297, 7
        %v1299 = vsub.s32 %v1296, %v1298
        %v1300 = vrot.slane %v1292, %v1299
        %1301 = vset.pattern.permute.xlu0 1
        %1302 = vperm.xlu0 %1301, %v989
        %v1303 = vpop.permute.xlu0 %1302
        %v1306 = vunpack.c.l.s4 839922192
        %v1307 = vunpack.c.0.s8 %v1306
        %v1308 = vlaneseq
        %v1309 = vshrl.u32 %v1308, 7
        %v1310 = vsub.s32 %v1307, %v1309
        %v1311 = vrot.slane %v1303, %v1310
        %1312 = vset.pattern.permute.xlu0 1
        %1313 = vperm.xlu0 %1312, %v990
        %v1314 = vpop.permute.xlu0 %1313
        %v1317 = vunpack.c.l.s4 839922192
        %v1318 = vunpack.c.0.s8 %v1317
        %v1319 = vlaneseq
        %v1320 = vshrl.u32 %v1319, 7
        %v1321 = vsub.s32 %v1318, %v1320
        %v1322 = vrot.slane %v1314, %v1321
        %1323 = vset.pattern.permute.xlu0 1
        %1324 = vperm.xlu0 %1323, %v991
        %v1325 = vpop.permute.xlu0 %1324
        %v1328 = vunpack.c.l.s4 839922192
        %v1329 = vunpack.c.0.s8 %v1328
        %v1330 = vlaneseq
        %v1331 = vshrl.u32 %v1330, 7
        %v1332 = vsub.s32 %v1329, %v1331
        %v1333 = vrot.slane %v1325, %v1332
        %1334 = vset.pattern.permute.xlu0 1
        %1335 = vperm.xlu0 %1334, %v992
        %v1336 = vpop.permute.xlu0 %1335
        %v1339 = vunpack.c.l.s4 839922192
        %v1340 = vunpack.c.0.s8 %v1339
        %v1341 = vlaneseq
        %v1342 = vshrl.u32 %v1341, 7
        %v1343 = vsub.s32 %v1340, %v1342
        %v1344 = vrot.slane %v1336, %v1343
        %1345 = vset.pattern.permute.xlu0 1
        %1346 = vperm.xlu0 %1345, %v993
        %v1347 = vpop.permute.xlu0 %1346
        %v1350 = vunpack.c.l.s4 839922192
        %v1351 = vunpack.c.0.s8 %v1350
        %v1352 = vlaneseq
        %v1353 = vshrl.u32 %v1352, 7
        %v1354 = vsub.s32 %v1351, %v1353
        %v1355 = vrot.slane %v1347, %v1354
        %1356 = vset.pattern.permute.xlu0 1
        %1357 = vperm.xlu0 %1356, %v994
        %v1358 = vpop.permute.xlu0 %1357
        %v1361 = vunpack.c.l.s4 839922192
        %v1362 = vunpack.c.0.s8 %v1361
        %v1363 = vlaneseq
        %v1364 = vshrl.u32 %v1363, 7
        %v1365 = vsub.s32 %v1362, %v1364
        %v1366 = vrot.slane %v1358, %v1365
        %1367 = vset.pattern.permute.xlu0 1
        %1368 = vperm.xlu0 %1367, %v995
        %v1369 = vpop.permute.xlu0 %1368
        %v1372 = vunpack.c.l.s4 839922192
        %v1373 = vunpack.c.0.s8 %v1372
        %v1374 = vlaneseq
        %v1375 = vshrl.u32 %v1374, 7
        %v1376 = vsub.s32 %v1373, %v1375
        %v1377 = vrot.slane %v1369, %v1376
        %1378 = vset.pattern.permute.xlu0 1
        %1379 = vperm.xlu0 %1378, %v996
        %v1380 = vpop.permute.xlu0 %1379
        %v1383 = vunpack.c.l.s4 839922192
        %v1384 = vunpack.c.0.s8 %v1383
        %v1385 = vlaneseq
        %v1386 = vshrl.u32 %v1385, 7
        %v1387 = vsub.s32 %v1384, %v1386
        %v1388 = vrot.slane %v1380, %v1387
        %1389 = vset.pattern.permute.xlu0 1
        %1390 = vperm.xlu0 %1389, %v997
        %v1391 = vpop.permute.xlu0 %1390
        %v1394 = vunpack.c.l.s4 839922192
        %v1395 = vunpack.c.0.s8 %v1394
        %v1396 = vlaneseq
        %v1397 = vshrl.u32 %v1396, 7
        %v1398 = vsub.s32 %v1395, %v1397
        %v1399 = vrot.slane %v1391, %v1398
        %vm1416 = vcmask 1044484
        %vm1417 = vmor %vm722, %vm1416
        %v1418 = vrot.slane %v1234, 7
        %v1419 = vrot.slane %v1418, 4
        %v1420 = vrot.slane %v1245, 7
        %v1421 = vsel %vm1417, %v1419, %v1420
        %v1422 = vrot.slane %v1420, 4
        %v1423 = vrot.slane %v1256, 7
        %v1424 = vsel %vm1417, %v1422, %v1423
        %v1425 = vrot.slane %v1423, 4
        %v1426 = vrot.slane %v1267, 7
        %v1427 = vsel %vm1417, %v1425, %v1426
        %v1428 = vrot.slane %v1426, 4
        %v1429 = vrot.slane %v1278, 7
        %v1430 = vsel %vm1417, %v1428, %v1429
        %v1431 = vrot.slane %v1429, 4
        %v1432 = vrot.slane %v1289, 7
        %v1433 = vsel %vm1417, %v1431, %v1432
        %v1434 = vrot.slane %v1432, 4
        %v1435 = vrot.slane %v1300, 7
        %v1436 = vsel %vm1417, %v1434, %v1435
        %v1437 = vrot.slane %v1435, 4
        %v1438 = vrot.slane %v1311, 7
        %v1439 = vsel %vm1417, %v1437, %v1438
        %v1440 = vrot.slane %v1438, 4
        %v1441 = vrot.slane %v1322, 7
        %v1442 = vsel %vm1417, %v1440, %v1441
        %v1443 = vrot.slane %v1441, 4
        %v1444 = vrot.slane %v1333, 7
        %v1445 = vsel %vm1417, %v1443, %v1444
        %v1446 = vrot.slane %v1444, 4
        %v1447 = vrot.slane %v1344, 7
        %v1448 = vsel %vm1417, %v1446, %v1447
        %v1449 = vrot.slane %v1447, 4
        %v1450 = vrot.slane %v1355, 7
        %v1451 = vsel %vm1417, %v1449, %v1450
        %v1452 = vrot.slane %v1450, 4
        %v1453 = vrot.slane %v1366, 7
        %v1454 = vsel %vm1417, %v1452, %v1453
        %v1455 = vrot.slane %v1453, 4
        %v1456 = vrot.slane %v1377, 7
        %v1457 = vsel %vm1417, %v1455, %v1456
        %v1458 = vrot.slane %v1456, 4
        %v1459 = vrot.slane %v1388, 7
        %v1460 = vsel %vm1417, %v1458, %v1459
        %v1461 = vrot.slane %v1459, 4
        %v1462 = vrot.slane %v1399, 7
        %v1463 = vsel %vm1417, %v1461, %v1462
        %v1464 = vrot.slane %v1462, 4
        %v1482 = vmul.bf16 %v1223, %v1418
        %v1483 = vmul.bf16 %v1207, %v1421
        %v1484 = vmul.bf16 %v1208, %v1424
        %v1485 = vmul.bf16 %v1209, %v1427
        %v1486 = vmul.bf16 %v1210, %v1430
        %v1487 = vmul.bf16 %v1211, %v1433
        %v1488 = vmul.bf16 %v1212, %v1436
        %v1489 = vmul.bf16 %v1213, %v1439
        %v1490 = vmul.bf16 %v1214, %v1442
        %v1491 = vmul.bf16 %v1215, %v1445
        %v1492 = vmul.bf16 %v1216, %v1448
        %v1493 = vmul.bf16 %v1217, %v1451
        %v1494 = vmul.bf16 %v1218, %v1454
        %v1495 = vmul.bf16 %v1219, %v1457
        %v1496 = vmul.bf16 %v1220, %v1460
        %v1497 = vmul.bf16 %v1221, %v1463
        %v1498 = vmul.bf16 %v1222, %v1464
        %v1499 = vld [vmem:[%s3] sm:$0xf]
        %v1500 = vld [vmem:[%s3 + $0x4] sm:$0xf]
        %v1501 = vld [vmem:[%s3 + $0x8] sm:$0xf]
        %v1502 = vld [vmem:[%s3 + $0xc] sm:$0xf]
        %v1503 = vld [vmem:[%s3 + $0x10] sm:$0xf]
        %v1504 = vld [vmem:[%s3 + $0x14] sm:$0xf]
        %v1505 = vld [vmem:[%s3 + $0x18] sm:$0xf]
        %v1506 = vld [vmem:[%s3 + $0x1c] sm:$0xf]
        %v1507 = vld [vmem:[%s3 + $0x20] sm:$0xf]
        %v1508 = vld [vmem:[%s3 + $0x24] sm:$0xf]
        %v1509 = vld [vmem:[%s3 + $0x28] sm:$0xf]
        %v1510 = vld [vmem:[%s3 + $0x2c] sm:$0xf]
        %v1511 = vld [vmem:[%s3 + $0x30] sm:$0xf]
        %v1512 = vld [vmem:[%s3 + $0x34] sm:$0xf]
        %v1513 = vld [vmem:[%s3 + $0x38] sm:$0xf]
        %v1514 = vld [vmem:[%s3 + $0x3c] sm:$0xf]
        %s1515 = scalar_lea.vmem %s3, 64
        %v1516 = vld [vmem:[%s1515] sm:$0xf]
        %v1517 = vld [vmem:[%s1515 + $0x4] sm:$0xf]
        %v1518 = vld [vmem:[%s1515 + $0x8] sm:$0xf]
        %v1519 = vld [vmem:[%s1515 + $0xc] sm:$0xf]
        %v1520 = vld [vmem:[%s1515 + $0x10] sm:$0xf]
        %v1521 = vld [vmem:[%s1515 + $0x14] sm:$0xf]
        %v1522 = vld [vmem:[%s1515 + $0x18] sm:$0xf]
        %v1523 = vld [vmem:[%s1515 + $0x1c] sm:$0xf]
        %v1524 = vld [vmem:[%s1515 + $0x20] sm:$0xf]
        %v1525 = vld [vmem:[%s1515 + $0x24] sm:$0xf]
        %v1526 = vld [vmem:[%s1515 + $0x28] sm:$0xf]
        %v1527 = vld [vmem:[%s1515 + $0x2c] sm:$0xf]
        %v1528 = vld [vmem:[%s1515 + $0x30] sm:$0xf]
        %v1529 = vld [vmem:[%s1515 + $0x34] sm:$0xf]
        %v1530 = vld [vmem:[%s1515 + $0x38] sm:$0xf]
        %v1531 = vld [vmem:[%s1515 + $0x3c] sm:$0xf]
        %v1549 = vunpack.c.l.b16 %v1206
        %v1550 = vunpack.c.l.b16 %v1207
        %v1551 = vunpack.c.l.b16 %v1208
        %v1552 = vunpack.c.l.b16 %v1209
        %v1553 = vunpack.c.l.b16 %v1210
        %v1554 = vunpack.c.l.b16 %v1211
        %v1555 = vunpack.c.l.b16 %v1212
        %v1556 = vunpack.c.l.b16 %v1213
        %v1557 = vunpack.c.l.b16 %v1214
        %v1558 = vunpack.c.l.b16 %v1215
        %v1559 = vunpack.c.l.b16 %v1216
        %v1560 = vunpack.c.l.b16 %v1217
        %v1561 = vunpack.c.l.b16 %v1218
        %v1562 = vunpack.c.l.b16 %v1219
        %v1563 = vunpack.c.l.b16 %v1220
        %v1564 = vunpack.c.l.b16 %v1221
        %v1565 = vunpack.c.l.b16 %v1222
        %v1566 = vpack.c.b16 %v1550, %v1549
        %v1567 = vpack.c.b16 %v1552, %v1551
        %v1568 = vpack.c.b16 %v1554, %v1553
        %v1569 = vpack.c.b16 %v1556, %v1555
        %v1570 = vpack.c.b16 %v1558, %v1557
        %v1571 = vpack.c.b16 %v1560, %v1559
        %v1572 = vpack.c.b16 %v1562, %v1561
        %v1573 = vpack.c.b16 %v1564, %v1563
        %v1574 = vpack.c.b16 %v1565, %v1565
        %vm1575 = vsmask.f32 7424
        %v1577 = vshrl.u32 %v1566, 16
        %v1579 = vshll.u32 %v1566, 16
        %v1581 = vrot.slane %v1579, 1
        %v1582 = vor.u32 %v1577, %v1581
        %v1584 = vshll.u32 %v1567, 16
        %v1586 = vrot.slane %v1584, 1
        %v1587 = vsel %vm1575, %v1582, %v1586
        %v1588 = vshrl.u32 %v1567, 16
        %v1590 = vor.u32 %v1588, %v1586
        %v1592 = vshll.u32 %v1568, 16
        %v1594 = vrot.slane %v1592, 1
        %v1595 = vsel %vm1575, %v1590, %v1594
        %v1596 = vshrl.u32 %v1568, 16
        %v1598 = vor.u32 %v1596, %v1594
        %v1600 = vshll.u32 %v1569, 16
        %v1602 = vrot.slane %v1600, 1
        %v1603 = vsel %vm1575, %v1598, %v1602
        %v1604 = vshrl.u32 %v1569, 16
        %v1606 = vor.u32 %v1604, %v1602
        %v1608 = vshll.u32 %v1570, 16
        %v1610 = vrot.slane %v1608, 1
        %v1611 = vsel %vm1575, %v1606, %v1610
        %v1612 = vshrl.u32 %v1570, 16
        %v1614 = vor.u32 %v1612, %v1610
        %v1616 = vshll.u32 %v1571, 16
        %v1618 = vrot.slane %v1616, 1
        %v1619 = vsel %vm1575, %v1614, %v1618
        %v1620 = vshrl.u32 %v1571, 16
        %v1622 = vor.u32 %v1620, %v1618
        %v1624 = vshll.u32 %v1572, 16
        %v1626 = vrot.slane %v1624, 1
        %v1627 = vsel %vm1575, %v1622, %v1626
        %v1628 = vshrl.u32 %v1572, 16
        %v1630 = vor.u32 %v1628, %v1626
        %v1632 = vshll.u32 %v1573, 16
        %v1634 = vrot.slane %v1632, 1
        %v1635 = vsel %vm1575, %v1630, %v1634
        %v1636 = vshrl.u32 %v1573, 16
        %v1638 = vor.u32 %v1636, %v1634
        %v1640 = vshll.u32 %v1574, 16
        %v1642 = vrot.slane %v1640, 1
        %v1643 = vsel %vm1575, %v1638, %v1642
        %v1668 = vunpack.c.l.b16 %v1516
        %v1669 = vunpack.c.l.b16 %v1517
        %v1670 = vunpack.c.l.b16 %v1518
        %v1671 = vunpack.c.l.b16 %v1519
        %v1672 = vunpack.c.l.b16 %v1520
        %v1673 = vunpack.c.l.b16 %v1521
        %v1674 = vunpack.c.l.b16 %v1522
        %v1675 = vunpack.c.l.b16 %v1523
        %v1676 = vunpack.c.l.b16 %v1524
        %v1677 = vunpack.c.l.b16 %v1525
        %v1678 = vunpack.c.l.b16 %v1526
        %v1679 = vunpack.c.l.b16 %v1527
        %v1680 = vunpack.c.l.b16 %v1528
        %v1681 = vunpack.c.l.b16 %v1529
        %v1682 = vunpack.c.l.b16 %v1530
        %v1683 = vunpack.c.l.b16 %v1531
        %v1684 = vpack.c.b16 %v1669, %v1668
        %v1685 = vpack.c.b16 %v1671, %v1670
        %v1686 = vpack.c.b16 %v1673, %v1672
        %v1687 = vpack.c.b16 %v1675, %v1674
        %v1688 = vpack.c.b16 %v1677, %v1676
        %v1689 = vpack.c.b16 %v1679, %v1678
        %v1690 = vpack.c.b16 %v1681, %v1680
        %v1691 = vpack.c.b16 %v1683, %v1682
        %1700 = vmatprep.subr.bf16.mxu0 0
        %1701 = vmatpush1.bf16.msra.mxu0 %v1684
        %1702 = vmatprep.subr.bf16.mxu0 0
        %1703 = vmatpush1.bf16.msra.mxu0 %v1685
        %1704 = vmatprep.subr.bf16.mxu0 0
        %1705 = vmatpush1.bf16.msra.mxu0 %v1686
        %1706 = vmatprep.subr.bf16.mxu0 0
        %1707 = vmatpush1.bf16.msra.mxu0 %v1687
        %1708 = vmatprep.subr.bf16.mxu0 0
        %1709 = vmatpush1.bf16.msra.mxu0 %v1688
        %1710 = vmatprep.subr.bf16.mxu0 0
        %1711 = vmatpush1.bf16.msra.mxu0 %v1689
        %1712 = vmatprep.subr.bf16.mxu0 0
        %1713 = vmatpush1.bf16.msra.mxu0 %v1690
        %1714 = vmatprep.subr.bf16.mxu0 0
        %1715 = vmatpush1.bf16.msra.mxu0 %v1691
        %1716 = vmatprep.subr.bf16.mxu0 0
        %1717 = vmatpush1.bf16.msra.mxu0 0
        %1718 = vmatprep.subr.bf16.mxu0 0
        %1719 = vmatpush1.bf16.msra.mxu0 0
        %1720 = vmatprep.subr.bf16.mxu0 0
        %1721 = vmatpush1.bf16.msra.mxu0 0
        %1722 = vmatprep.subr.bf16.mxu0 0
        %1723 = vmatpush1.bf16.msra.mxu0 0
        %1724 = vmatprep.subr.bf16.mxu0 0
        %1725 = vmatpush1.bf16.msra.mxu0 0
        %1726 = vmatprep.subr.bf16.mxu0 0
        %1727 = vmatpush1.bf16.msra.mxu0 0
        %1728 = vmatprep.subr.bf16.mxu0 0
        %1729 = vmatpush1.bf16.msra.mxu0 0
        %1730 = vmatprep.subr.bf16.mxu0 0
        %1731 = vmatpush1.bf16.msra.mxu0 0
        %1732 = vmatprep.mubr.bf16.mxu0 0
        %1733 = vmatmul.mubr.bf16.gmra.mrb[0].mxu0 %v1587
        %v1734 = vpop.f32.mrb[0].mxu0
        %v1735 = vadd.f32 0.0, %v1734
        %v1736 = vpop.f32.mrb[0].mxu0
        %v1737 = vpop.f32.mrb[0].mxu0
        %v1738 = vadd.f32 0.0, %v1737
        %v1739 = vpop.f32.mrb[0].mxu0
        %1740 = vmatprep.mubr.bf16.mxu0 0
        %1741 = vmatmul.mubr.bf16.gmra.mrb[0].mxu0 %v1595
        %v1742 = vpop.f32.mrb[0].mxu0
        %v1743 = vadd.f32 0.0, %v1742
        %v1744 = vpop.f32.mrb[0].mxu0
        %v1745 = vpop.f32.mrb[0].mxu0
        %v1746 = vadd.f32 0.0, %v1745
        %v1747 = vpop.f32.mrb[0].mxu0
        %1748 = vmatprep.mubr.bf16.mxu0 0
        %1749 = vmatmul.mubr.bf16.gmra.mrb[0].mxu0 %v1603
        %v1750 = vpop.f32.mrb[0].mxu0
        %v1751 = vadd.f32 0.0, %v1750
        %v1752 = vpop.f32.mrb[0].mxu0
        %v1753 = vpop.f32.mrb[0].mxu0
        %v1754 = vadd.f32 0.0, %v1753
        %v1755 = vpop.f32.mrb[0].mxu0
        %1756 = vmatprep.mubr.bf16.mxu0 0
        %1757 = vmatmul.mubr.bf16.gmra.mrb[0].mxu0 %v1611
        %v1758 = vpop.f32.mrb[0].mxu0
        %v1759 = vadd.f32 0.0, %v1758
        %v1760 = vpop.f32.mrb[0].mxu0
        %v1761 = vpop.f32.mrb[0].mxu0
        %v1762 = vadd.f32 0.0, %v1761
        %v1763 = vpop.f32.mrb[0].mxu0
        %1764 = vmatprep.mubr.bf16.mxu0 0
        %1765 = vmatmul.mubr.bf16.gmra.mrb[0].mxu0 %v1619
        %v1766 = vpop.f32.mrb[0].mxu0
        %v1767 = vadd.f32 0.0, %v1766
        %v1768 = vpop.f32.mrb[0].mxu0
        %v1769 = vpop.f32.mrb[0].mxu0
        %v1770 = vadd.f32 0.0, %v1769
        %v1771 = vpop.f32.mrb[0].mxu0
        %1772 = vmatprep.mubr.bf16.mxu0 0
        %1773 = vmatmul.mubr.bf16.gmra.mrb[0].mxu0 %v1627
        %v1774 = vpop.f32.mrb[0].mxu0
        %v1775 = vadd.f32 0.0, %v1774
        %v1776 = vpop.f32.mrb[0].mxu0
        %v1777 = vpop.f32.mrb[0].mxu0
        %v1778 = vadd.f32 0.0, %v1777
        %v1779 = vpop.f32.mrb[0].mxu0
        %1780 = vmatprep.mubr.bf16.mxu0 0
        %1781 = vmatmul.mubr.bf16.gmra.mrb[0].mxu0 %v1635
        %v1782 = vpop.f32.mrb[0].mxu0
        %v1783 = vadd.f32 0.0, %v1782
        %v1784 = vpop.f32.mrb[0].mxu0
        %v1785 = vpop.f32.mrb[0].mxu0
        %v1786 = vadd.f32 0.0, %v1785
        %v1787 = vpop.f32.mrb[0].mxu0
        %1788 = vmatprep.mubr.bf16.mxu0 0
        %1789 = vmatmul.mubr.bf16.gmra.mrb[0].mxu0 %v1643
        %v1790 = vpop.f32.mrb[0].mxu0
        %v1791 = vadd.f32 0.0, %v1790
        %v1792 = vpop.f32.mrb[0].mxu0
        %v1793 = vpop.f32.mrb[0].mxu0
        %v1794 = vadd.f32 0.0, %v1793
        %v1795 = vpop.f32.mrb[0].mxu0
        %1796 = vdwg.mxu0
        %v1813 = vunpack.c.l.b16 %v1190
        %v1814 = vunpack.c.l.b16 %v1191
        %v1815 = vunpack.c.l.b16 %v1192
        %v1816 = vunpack.c.l.b16 %v1193
        %v1817 = vunpack.c.l.b16 %v1194
        %v1818 = vunpack.c.l.b16 %v1195
        %v1819 = vunpack.c.l.b16 %v1196
        %v1820 = vunpack.c.l.b16 %v1197
        %v1821 = vunpack.c.l.b16 %v1198
        %v1822 = vunpack.c.l.b16 %v1199
        %v1823 = vunpack.c.l.b16 %v1200
        %v1824 = vunpack.c.l.b16 %v1201
        %v1825 = vunpack.c.l.b16 %v1202
        %v1826 = vunpack.c.l.b16 %v1203
        %v1827 = vunpack.c.l.b16 %v1204
        %v1828 = vunpack.c.l.b16 %v1205
        %v1829 = vpack.c.b16 %v1814, %v1813
        %v1830 = vpack.c.b16 %v1816, %v1815
        %v1831 = vpack.c.b16 %v1818, %v1817
        %v1832 = vpack.c.b16 %v1820, %v1819
        %v1833 = vpack.c.b16 %v1822, %v1821
        %v1834 = vpack.c.b16 %v1824, %v1823
        %v1835 = vpack.c.b16 %v1826, %v1825
        %v1836 = vpack.c.b16 %v1828, %v1827
        %v1861 = vunpack.c.l.b16 %v1499
        %v1862 = vunpack.c.l.b16 %v1500
        %v1863 = vunpack.c.l.b16 %v1501
        %v1864 = vunpack.c.l.b16 %v1502
        %v1865 = vunpack.c.l.b16 %v1503
        %v1866 = vunpack.c.l.b16 %v1504
        %v1867 = vunpack.c.l.b16 %v1505
        %v1868 = vunpack.c.l.b16 %v1506
        %v1869 = vunpack.c.l.b16 %v1507
        %v1870 = vunpack.c.l.b16 %v1508
        %v1871 = vunpack.c.l.b16 %v1509
        %v1872 = vunpack.c.l.b16 %v1510
        %v1873 = vunpack.c.l.b16 %v1511
        %v1874 = vunpack.c.l.b16 %v1512
        %v1875 = vunpack.c.l.b16 %v1513
        %v1876 = vunpack.c.l.b16 %v1514
        %v1877 = vpack.c.b16 %v1862, %v1861
        %v1878 = vpack.c.b16 %v1864, %v1863
        %v1879 = vpack.c.b16 %v1866, %v1865
        %v1880 = vpack.c.b16 %v1868, %v1867
        %v1881 = vpack.c.b16 %v1870, %v1869
        %v1882 = vpack.c.b16 %v1872, %v1871
        %v1883 = vpack.c.b16 %v1874, %v1873
        %v1884 = vpack.c.b16 %v1876, %v1875
        %1893 = vmatprep.subr.bf16.mxu0 0
        %1894 = vmatpush1.bf16.msra.mxu0 %v1877
        %1895 = vmatprep.subr.bf16.mxu0 0
        %1896 = vmatpush1.bf16.msra.mxu0 %v1878
        %1897 = vmatprep.subr.bf16.mxu0 0
        %1898 = vmatpush1.bf16.msra.mxu0 %v1879
        %1899 = vmatprep.subr.bf16.mxu0 0
        %1900 = vmatpush1.bf16.msra.mxu0 %v1880
        %1901 = vmatprep.subr.bf16.mxu0 0
        %1902 = vmatpush1.bf16.msra.mxu0 %v1881
        %1903 = vmatprep.subr.bf16.mxu0 0
        %1904 = vmatpush1.bf16.msra.mxu0 %v1882
        %1905 = vmatprep.subr.bf16.mxu0 0
        %1906 = vmatpush1.bf16.msra.mxu0 %v1883
        %1907 = vmatprep.subr.bf16.mxu0 0
        %1908 = vmatpush1.bf16.msra.mxu0 %v1884
        %1909 = vmatprep.subr.bf16.mxu0 0
        %1910 = vmatpush1.bf16.msra.mxu0 0
        %1911 = vmatprep.subr.bf16.mxu0 0
        %1912 = vmatpush1.bf16.msra.mxu0 0
        %1913 = vmatprep.subr.bf16.mxu0 0
        %1914 = vmatpush1.bf16.msra.mxu0 0
        %1915 = vmatprep.subr.bf16.mxu0 0
        %1916 = vmatpush1.bf16.msra.mxu0 0
        %1917 = vmatprep.subr.bf16.mxu0 0
        %1918 = vmatpush1.bf16.msra.mxu0 0
        %1919 = vmatprep.subr.bf16.mxu0 0
        %1920 = vmatpush1.bf16.msra.mxu0 0
        %1921 = vmatprep.subr.bf16.mxu0 0
        %1922 = vmatpush1.bf16.msra.mxu0 0
        %1923 = vmatprep.subr.bf16.mxu0 0
        %1924 = vmatpush1.bf16.msra.mxu0 0
        %1925 = vmatprep.mubr.bf16.mxu0 0
        %1926 = vmatmul.mubr.bf16.gmra.mrb[0].mxu0 %v1829
        %v1927 = vpop.f32.mrb[0].mxu0
        %v1928 = vadd.f32 %v1735, %v1927
        %v1929 = vpop.f32.mrb[0].mxu0
        %v1930 = vpop.f32.mrb[0].mxu0
        %v1931 = vadd.f32 %v1738, %v1930
        %v1932 = vpop.f32.mrb[0].mxu0
        %1933 = vmatprep.mubr.bf16.mxu0 0
        %1934 = vmatmul.mubr.bf16.gmra.mrb[0].mxu0 %v1830
        %v1935 = vpop.f32.mrb[0].mxu0
        %v1936 = vadd.f32 %v1743, %v1935
        %v1937 = vpop.f32.mrb[0].mxu0
        %v1938 = vpop.f32.mrb[0].mxu0
        %v1939 = vadd.f32 %v1746, %v1938
        %v1940 = vpop.f32.mrb[0].mxu0
        %1941 = vmatprep.mubr.bf16.mxu0 0
        %1942 = vmatmul.mubr.bf16.gmra.mrb[0].mxu0 %v1831
        %v1943 = vpop.f32.mrb[0].mxu0
        %v1944 = vadd.f32 %v1751, %v1943
        %v1945 = vpop.f32.mrb[0].mxu0
        %v1946 = vpop.f32.mrb[0].mxu0
        %v1947 = vadd.f32 %v1754, %v1946
        %v1948 = vpop.f32.mrb[0].mxu0
        %1949 = vmatprep.mubr.bf16.mxu0 0
        %1950 = vmatmul.mubr.bf16.gmra.mrb[0].mxu0 %v1832
        %v1951 = vpop.f32.mrb[0].mxu0
        %v1952 = vadd.f32 %v1759, %v1951
        %v1953 = vpop.f32.mrb[0].mxu0
        %v1954 = vpop.f32.mrb[0].mxu0
        %v1955 = vadd.f32 %v1762, %v1954
        %v1956 = vpop.f32.mrb[0].mxu0
        %1957 = vmatprep.mubr.bf16.mxu0 0
        %1958 = vmatmul.mubr.bf16.gmra.mrb[0].mxu0 %v1833
        %v1959 = vpop.f32.mrb[0].mxu0
        %v1960 = vadd.f32 %v1767, %v1959
        %v1961 = vpop.f32.mrb[0].mxu0
        %v1962 = vpop.f32.mrb[0].mxu0
        %v1963 = vadd.f32 %v1770, %v1962
        %v1964 = vpop.f32.mrb[0].mxu0
        %1965 = vmatprep.mubr.bf16.mxu0 0
        %1966 = vmatmul.mubr.bf16.gmra.mrb[0].mxu0 %v1834
        %v1967 = vpop.f32.mrb[0].mxu0
        %v1968 = vadd.f32 %v1775, %v1967
        %v1969 = vpop.f32.mrb[0].mxu0
        %v1970 = vpop.f32.mrb[0].mxu0
        %v1971 = vadd.f32 %v1778, %v1970
        %v1972 = vpop.f32.mrb[0].mxu0
        %1973 = vmatprep.mubr.bf16.mxu0 0
        %1974 = vmatmul.mubr.bf16.gmra.mrb[0].mxu0 %v1835
        %v1975 = vpop.f32.mrb[0].mxu0
        %v1976 = vadd.f32 %v1783, %v1975
        %v1977 = vpop.f32.mrb[0].mxu0
        %v1978 = vpop.f32.mrb[0].mxu0
        %v1979 = vadd.f32 %v1786, %v1978
        %v1980 = vpop.f32.mrb[0].mxu0
        %1981 = vmatprep.mubr.bf16.mxu0 0
        %1982 = vmatmul.mubr.bf16.gmra.mrb[0].mxu0 %v1836
        %v1983 = vpop.f32.mrb[0].mxu0
        %v1984 = vadd.f32 %v1791, %v1983
        %v1985 = vpop.f32.mrb[0].mxu0
        %v1986 = vpop.f32.mrb[0].mxu0
        %v1987 = vadd.f32 %v1794, %v1986
        %v1988 = vpop.f32.mrb[0].mxu0
        %1989 = vdwg.mxu0
        %s1990 = scalar_lea.vmem %s3, 128
        %v1991 = vld [vmem:[%s1990] sm:$0xf]
        %v1992 = vld [vmem:[%s1990 + $0x4] sm:$0xf]
        %v1993 = vld [vmem:[%s1990 + $0x8] sm:$0xf]
        %v1994 = vld [vmem:[%s1990 + $0xc] sm:$0xf]
        %v1995 = vld [vmem:[%s1990 + $0x10] sm:$0xf]
        %v1996 = vld [vmem:[%s1990 + $0x14] sm:$0xf]
        %v1997 = vld [vmem:[%s1990 + $0x18] sm:$0xf]
        %v1998 = vld [vmem:[%s1990 + $0x1c] sm:$0xf]
        %v1999 = vld [vmem:[%s1990 + $0x20] sm:$0xf]
        %v2000 = vld [vmem:[%s1990 + $0x24] sm:$0xf]
        %v2001 = vld [vmem:[%s1990 + $0x28] sm:$0xf]
        %v2002 = vld [vmem:[%s1990 + $0x2c] sm:$0xf]
        %v2003 = vld [vmem:[%s1990 + $0x30] sm:$0xf]
        %v2004 = vld [vmem:[%s1990 + $0x34] sm:$0xf]
        %v2005 = vld [vmem:[%s1990 + $0x38] sm:$0xf]
        %v2006 = vld [vmem:[%s1990 + $0x3c] sm:$0xf]
        %v2024 = vunpack.c.l.b16 %v1482
        %v2025 = vunpack.c.l.b16 %v1483
        %v2026 = vunpack.c.l.b16 %v1484
        %v2027 = vunpack.c.l.b16 %v1485
        %v2028 = vunpack.c.l.b16 %v1486
        %v2029 = vunpack.c.l.b16 %v1487
        %v2030 = vunpack.c.l.b16 %v1488
        %v2031 = vunpack.c.l.b16 %v1489
        %v2032 = vunpack.c.l.b16 %v1490
        %v2033 = vunpack.c.l.b16 %v1491
        %v2034 = vunpack.c.l.b16 %v1492
        %v2035 = vunpack.c.l.b16 %v1493
        %v2036 = vunpack.c.l.b16 %v1494
        %v2037 = vunpack.c.l.b16 %v1495
        %v2038 = vunpack.c.l.b16 %v1496
        %v2039 = vunpack.c.l.b16 %v1497
        %v2040 = vunpack.c.l.b16 %v1498
        %v2041 = vpack.c.b16 %v2025, %v2024
        %v2042 = vpack.c.b16 %v2027, %v2026
        %v2043 = vpack.c.b16 %v2029, %v2028
        %v2044 = vpack.c.b16 %v2031, %v2030
        %v2045 = vpack.c.b16 %v2033, %v2032
        %v2046 = vpack.c.b16 %v2035, %v2034
        %v2047 = vpack.c.b16 %v2037, %v2036
        %v2048 = vpack.c.b16 %v2039, %v2038
        %v2049 = vpack.c.b16 %v2040, %v2040
        %vm2050 = vcmask 1046528
        %v2051 = vrot.slane %v2041, 1
        %v2052 = vrot.slane %v2042, 1
        %v2053 = vsel %vm2050, %v2051, %v2052
        %v2054 = vrot.slane %v2043, 1
        %v2055 = vsel %vm2050, %v2052, %v2054
        %v2056 = vrot.slane %v2044, 1
        %v2057 = vsel %vm2050, %v2054, %v2056
        %v2058 = vrot.slane %v2045, 1
        %v2059 = vsel %vm2050, %v2056, %v2058
        %v2060 = vrot.slane %v2046, 1
        %v2061 = vsel %vm2050, %v2058, %v2060
        %v2062 = vrot.slane %v2047, 1
        %v2063 = vsel %vm2050, %v2060, %v2062
        %v2064 = vrot.slane %v2048, 1
        %v2065 = vsel %vm2050, %v2062, %v2064
        %v2066 = vrot.slane %v2049, 1
        %v2067 = vsel %vm2050, %v2064, %v2066
        %v2092 = vunpack.c.l.b16 %v1991
        %v2093 = vunpack.c.l.b16 %v1992
        %v2094 = vunpack.c.l.b16 %v1993
        %v2095 = vunpack.c.l.b16 %v1994
        %v2096 = vunpack.c.l.b16 %v1995
        %v2097 = vunpack.c.l.b16 %v1996
        %v2098 = vunpack.c.l.b16 %v1997
        %v2099 = vunpack.c.l.b16 %v1998
        %v2100 = vunpack.c.l.b16 %v1999
        %v2101 = vunpack.c.l.b16 %v2000
        %v2102 = vunpack.c.l.b16 %v2001
        %v2103 = vunpack.c.l.b16 %v2002
        %v2104 = vunpack.c.l.b16 %v2003
        %v2105 = vunpack.c.l.b16 %v2004
        %v2106 = vunpack.c.l.b16 %v2005
        %v2107 = vunpack.c.l.b16 %v2006
        %v2108 = vpack.c.b16 %v2093, %v2092
        %v2109 = vpack.c.b16 %v2095, %v2094
        %v2110 = vpack.c.b16 %v2097, %v2096
        %v2111 = vpack.c.b16 %v2099, %v2098
        %v2112 = vpack.c.b16 %v2101, %v2100
        %v2113 = vpack.c.b16 %v2103, %v2102
        %v2114 = vpack.c.b16 %v2105, %v2104
        %v2115 = vpack.c.b16 %v2107, %v2106
        %2124 = vmatprep.subr.bf16.mxu0 0
        %2125 = vmatpush1.bf16.msra.mxu0 %v2108
        %2126 = vmatprep.subr.bf16.mxu0 0
        %2127 = vmatpush1.bf16.msra.mxu0 %v2109
        %2128 = vmatprep.subr.bf16.mxu0 0
        %2129 = vmatpush1.bf16.msra.mxu0 %v2110
        %2130 = vmatprep.subr.bf16.mxu0 0
        %2131 = vmatpush1.bf16.msra.mxu0 %v2111
        %2132 = vmatprep.subr.bf16.mxu0 0
        %2133 = vmatpush1.bf16.msra.mxu0 %v2112
        %2134 = vmatprep.subr.bf16.mxu0 0
        %2135 = vmatpush1.bf16.msra.mxu0 %v2113
        %2136 = vmatprep.subr.bf16.mxu0 0
        %2137 = vmatpush1.bf16.msra.mxu0 %v2114
        %2138 = vmatprep.subr.bf16.mxu0 0
        %2139 = vmatpush1.bf16.msra.mxu0 %v2115
        %2140 = vmatprep.subr.bf16.mxu0 0
        %2141 = vmatpush1.bf16.msra.mxu0 0
        %2142 = vmatprep.subr.bf16.mxu0 0
        %2143 = vmatpush1.bf16.msra.mxu0 0
        %2144 = vmatprep.subr.bf16.mxu0 0
        %2145 = vmatpush1.bf16.msra.mxu0 0
        %2146 = vmatprep.subr.bf16.mxu0 0
        %2147 = vmatpush1.bf16.msra.mxu0 0
        %2148 = vmatprep.subr.bf16.mxu0 0
        %2149 = vmatpush1.bf16.msra.mxu0 0
        %2150 = vmatprep.subr.bf16.mxu0 0
        %2151 = vmatpush1.bf16.msra.mxu0 0
        %2152 = vmatprep.subr.bf16.mxu0 0
        %2153 = vmatpush1.bf16.msra.mxu0 0
        %2154 = vmatprep.subr.bf16.mxu0 0
        %2155 = vmatpush1.bf16.msra.mxu0 0
        %2156 = vmatprep.mubr.bf16.mxu0 0
        %2157 = vmatmul.mubr.bf16.gmra.mrb[0].mxu0 %v2053
        %v2158 = vpop.f32.mrb[0].mxu0
        %v2159 = vadd.f32 0.0, %v2158
        %v2160 = vpop.f32.mrb[0].mxu0
        %v2161 = vpop.f32.mrb[0].mxu0
        %v2162 = vadd.f32 0.0, %v2161
        %v2163 = vpop.f32.mrb[0].mxu0
        %2164 = vmatprep.mubr.bf16.mxu0 0
        %2165 = vmatmul.mubr.bf16.gmra.mrb[0].mxu0 %v2055
        %v2166 = vpop.f32.mrb[0].mxu0
        %v2167 = vadd.f32 0.0, %v2166
        %v2168 = vpop.f32.mrb[0].mxu0
        %v2169 = vpop.f32.mrb[0].mxu0
        %v2170 = vadd.f32 0.0, %v2169
        %v2171 = vpop.f32.mrb[0].mxu0
        %2172 = vmatprep.mubr.bf16.mxu0 0
        %2173 = vmatmul.mubr.bf16.gmra.mrb[0].mxu0 %v2057
        %v2174 = vpop.f32.mrb[0].mxu0
        %v2175 = vadd.f32 0.0, %v2174
        %v2176 = vpop.f32.mrb[0].mxu0
        %v2177 = vpop.f32.mrb[0].mxu0
        %v2178 = vadd.f32 0.0, %v2177
        %v2179 = vpop.f32.mrb[0].mxu0
        %2180 = vmatprep.mubr.bf16.mxu0 0
        %2181 = vmatmul.mubr.bf16.gmra.mrb[0].mxu0 %v2059
        %v2182 = vpop.f32.mrb[0].mxu0
        %v2183 = vadd.f32 0.0, %v2182
        %v2184 = vpop.f32.mrb[0].mxu0
        %v2185 = vpop.f32.mrb[0].mxu0
        %v2186 = vadd.f32 0.0, %v2185
        %v2187 = vpop.f32.mrb[0].mxu0
        %2188 = vmatprep.mubr.bf16.mxu0 0
        %2189 = vmatmul.mubr.bf16.gmra.mrb[0].mxu0 %v2061
        %v2190 = vpop.f32.mrb[0].mxu0
        %v2191 = vadd.f32 0.0, %v2190
        %v2192 = vpop.f32.mrb[0].mxu0
        %v2193 = vpop.f32.mrb[0].mxu0
        %v2194 = vadd.f32 0.0, %v2193
        %v2195 = vpop.f32.mrb[0].mxu0
        %2196 = vmatprep.mubr.bf16.mxu0 0
        %2197 = vmatmul.mubr.bf16.gmra.mrb[0].mxu0 %v2063
        %v2198 = vpop.f32.mrb[0].mxu0
        %v2199 = vadd.f32 0.0, %v2198
        %v2200 = vpop.f32.mrb[0].mxu0
        %v2201 = vpop.f32.mrb[0].mxu0
        %v2202 = vadd.f32 0.0, %v2201
        %v2203 = vpop.f32.mrb[0].mxu0
        %2204 = vmatprep.mubr.bf16.mxu0 0
        %2205 = vmatmul.mubr.bf16.gmra.mrb[0].mxu0 %v2065
        %v2206 = vpop.f32.mrb[0].mxu0
        %v2207 = vadd.f32 0.0, %v2206
        %v2208 = vpop.f32.mrb[0].mxu0
        %v2209 = vpop.f32.mrb[0].mxu0
        %v2210 = vadd.f32 0.0, %v2209
        %v2211 = vpop.f32.mrb[0].mxu0
        %2212 = vmatprep.mubr.bf16.mxu0 0
        %2213 = vmatmul.mubr.bf16.gmra.mrb[0].mxu0 %v2067
        %v2214 = vpop.f32.mrb[0].mxu0
        %v2215 = vadd.f32 0.0, %v2214
        %v2216 = vpop.f32.mrb[0].mxu0
        %v2217 = vpop.f32.mrb[0].mxu0
        %v2218 = vadd.f32 0.0, %v2217
        %v2219 = vpop.f32.mrb[0].mxu0
        %2220 = vdwg.mxu0
        %v2221 = vadd.f32 %v1928, %v2159
        %v2222 = vadd.f32 %v1931, %v2162
        %v2223 = vadd.f32 %v1936, %v2167
        %v2224 = vadd.f32 %v1939, %v2170
        %v2225 = vadd.f32 %v1944, %v2175
        %v2226 = vadd.f32 %v1947, %v2178
        %v2227 = vadd.f32 %v1952, %v2183
        %v2228 = vadd.f32 %v1955, %v2186
        %v2229 = vadd.f32 %v1960, %v2191
        %v2230 = vadd.f32 %v1963, %v2194
        %v2231 = vadd.f32 %v1968, %v2199
        %v2232 = vadd.f32 %v1971, %v2202
        %v2233 = vadd.f32 %v1976, %v2207
        %v2234 = vadd.f32 %v1979, %v2210
        %v2235 = vadd.f32 %v1984, %v2215
        %v2236 = vadd.f32 %v1987, %v2218
        %v2237 = vld [vmem:[%s4] sm:$0x1]
        %v2238 = vlaneseq
        %v2239 = vshrl.u32 %v2238, 7
        %v2240 = vsub.s32 0, %v2239
        %v2241 = vrot.slane %v2237, %v2240
        %v2242 = vadd.f32 %v2221, %v2241
        %v2243 = vadd.f32 %v2222, %v2241
        %v2244 = vadd.f32 %v2223, %v2241
        %v2245 = vadd.f32 %v2224, %v2241
        %v2246 = vadd.f32 %v2225, %v2241
        %v2247 = vadd.f32 %v2226, %v2241
        %v2248 = vadd.f32 %v2227, %v2241
        %v2249 = vadd.f32 %v2228, %v2241
        %v2250 = vadd.f32 %v2229, %v2241
        %v2251 = vadd.f32 %v2230, %v2241
        %v2252 = vadd.f32 %v2231, %v2241
        %v2253 = vadd.f32 %v2232, %v2241
        %v2254 = vadd.f32 %v2233, %v2241
        %v2255 = vadd.f32 %v2234, %v2241
        %v2256 = vadd.f32 %v2235, %v2241
        %v2257 = vadd.f32 %v2236, %v2241
        %vm2258 = vcmp.gt.f32.partialorder %v2242, 0.0
        %vm2259 = vcmp.gt.f32.partialorder %v2243, 0.0
        %vm2260 = vcmp.gt.f32.partialorder %v2244, 0.0
        %vm2261 = vcmp.gt.f32.partialorder %v2245, 0.0
        %vm2262 = vcmp.gt.f32.partialorder %v2246, 0.0
        %vm2263 = vcmp.gt.f32.partialorder %v2247, 0.0
        %vm2264 = vcmp.gt.f32.partialorder %v2248, 0.0
        %vm2265 = vcmp.gt.f32.partialorder %v2249, 0.0
        %vm2266 = vcmp.gt.f32.partialorder %v2250, 0.0
        %vm2267 = vcmp.gt.f32.partialorder %v2251, 0.0
        %vm2268 = vcmp.gt.f32.partialorder %v2252, 0.0
        %vm2269 = vcmp.gt.f32.partialorder %v2253, 0.0
        %vm2270 = vcmp.gt.f32.partialorder %v2254, 0.0
        %vm2271 = vcmp.gt.f32.partialorder %v2255, 0.0
        %vm2272 = vcmp.gt.f32.partialorder %v2256, 0.0
        %vm2273 = vcmp.gt.f32.partialorder %v2257, 0.0
        %v2274 = vmul.f32 %v2242, 1.442695
        %v2275 = vpow.pop %v2274
        %v2276 = vmul.f32 %v2243, 1.442695
        %v2277 = vpow.pop %v2276
        %v2278 = vmul.f32 %v2244, 1.442695
        %v2279 = vpow.pop %v2278
        %v2280 = vmul.f32 %v2245, 1.442695
        %v2281 = vpow.pop %v2280
        %v2282 = vmul.f32 %v2246, 1.442695
        %v2283 = vpow.pop %v2282
        %v2284 = vmul.f32 %v2247, 1.442695
        %v2285 = vpow.pop %v2284
        %v2286 = vmul.f32 %v2248, 1.442695
        %v2287 = vpow.pop %v2286
        %v2288 = vmul.f32 %v2249, 1.442695
        %v2289 = vpow.pop %v2288
        %v2290 = vmul.f32 %v2250, 1.442695
        %v2291 = vpow.pop %v2290
        %v2292 = vmul.f32 %v2251, 1.442695
        %v2293 = vpow.pop %v2292
        %v2294 = vmul.f32 %v2252, 1.442695
        %v2295 = vpow.pop %v2294
        %v2296 = vmul.f32 %v2253, 1.442695
        %v2297 = vpow.pop %v2296
        %v2298 = vmul.f32 %v2254, 1.442695
        %v2299 = vpow.pop %v2298
        %v2300 = vmul.f32 %v2255, 1.442695
        %v2301 = vpow.pop %v2300
        %v2302 = vmul.f32 %v2256, 1.442695
        %v2303 = vpow.pop %v2302
        %v2304 = vmul.f32 %v2257, 1.442695
        %v2305 = vpow.pop %v2304
        %v2306 = vsub.f32 %v2275, 1.0
        %v2307 = vsub.f32 %v2277, 1.0
        %v2308 = vsub.f32 %v2279, 1.0
        %v2309 = vsub.f32 %v2281, 1.0
        %v2310 = vsub.f32 %v2283, 1.0
        %v2311 = vsub.f32 %v2285, 1.0
        %v2312 = vsub.f32 %v2287, 1.0
        %v2313 = vsub.f32 %v2289, 1.0
        %v2314 = vsub.f32 %v2291, 1.0
        %v2315 = vsub.f32 %v2293, 1.0
        %v2316 = vsub.f32 %v2295, 1.0
        %v2317 = vsub.f32 %v2297, 1.0
        %v2318 = vsub.f32 %v2299, 1.0
        %v2319 = vsub.f32 %v2301, 1.0
        %v2320 = vsub.f32 %v2303, 1.0
        %v2321 = vsub.f32 %v2305, 1.0
        %v2322 = vmul.f32 %v2306, 1.6732632
        %v2323 = vmul.f32 %v2307, 1.6732632
        %v2324 = vmul.f32 %v2308, 1.6732632
        %v2325 = vmul.f32 %v2309, 1.6732632
        %v2326 = vmul.f32 %v2310, 1.6732632
        %v2327 = vmul.f32 %v2311, 1.6732632
        %v2328 = vmul.f32 %v2312, 1.6732632
        %v2329 = vmul.f32 %v2313, 1.6732632
        %v2330 = vmul.f32 %v2314, 1.6732632
        %v2331 = vmul.f32 %v2315, 1.6732632
        %v2332 = vmul.f32 %v2316, 1.6732632
        %v2333 = vmul.f32 %v2317, 1.6732632
        %v2334 = vmul.f32 %v2318, 1.6732632
        %v2335 = vmul.f32 %v2319, 1.6732632
        %v2336 = vmul.f32 %v2320, 1.6732632
        %v2337 = vmul.f32 %v2321, 1.6732632
        %v2338 = vsel %vm2258, %v2242, %v2322
        %v2339 = vsel %vm2259, %v2243, %v2323
        %v2340 = vsel %vm2260, %v2244, %v2324
        %v2341 = vsel %vm2261, %v2245, %v2325
        %v2342 = vsel %vm2262, %v2246, %v2326
        %v2343 = vsel %vm2263, %v2247, %v2327
        %v2344 = vsel %vm2264, %v2248, %v2328
        %v2345 = vsel %vm2265, %v2249, %v2329
        %v2346 = vsel %vm2266, %v2250, %v2330
        %v2347 = vsel %vm2267, %v2251, %v2331
        %v2348 = vsel %vm2268, %v2252, %v2332
        %v2349 = vsel %vm2269, %v2253, %v2333
        %v2350 = vsel %vm2270, %v2254, %v2334
        %v2351 = vsel %vm2271, %v2255, %v2335
        %v2352 = vsel %vm2272, %v2256, %v2336
        %v2353 = vsel %vm2273, %v2257, %v2337
        %v2354 = vmul.f32 %v2338, 1.050701
        %v2355 = vmul.f32 %v2339, 1.050701
        %v2356 = vmul.f32 %v2340, 1.050701
        %v2357 = vmul.f32 %v2341, 1.050701
        %v2358 = vmul.f32 %v2342, 1.050701
        %v2359 = vmul.f32 %v2343, 1.050701
        %v2360 = vmul.f32 %v2344, 1.050701
        %v2361 = vmul.f32 %v2345, 1.050701
        %v2362 = vmul.f32 %v2346, 1.050701
        %v2363 = vmul.f32 %v2347, 1.050701
        %v2364 = vmul.f32 %v2348, 1.050701
        %v2365 = vmul.f32 %v2349, 1.050701
        %v2366 = vmul.f32 %v2350, 1.050701
        %v2367 = vmul.f32 %v2351, 1.050701
        %v2368 = vmul.f32 %v2352, 1.050701
        %v2369 = vmul.f32 %v2353, 1.050701
        %v2370 = vld [vmem:[%s4 + $0x1] sm:$0x1]
        %v2371 = vlaneseq
        %v2372 = vshrl.u32 %v2371, 7
        %v2373 = vsub.s32 0, %v2372
        %v2374 = vrot.slane %v2370, %v2373
        %v2375 = vmul.f32 %v2354, %v2374
        %v2376 = vmul.f32 %v2355, %v2374
        %v2377 = vmul.f32 %v2356, %v2374
        %v2378 = vmul.f32 %v2357, %v2374
        %v2379 = vmul.f32 %v2358, %v2374
        %v2380 = vmul.f32 %v2359, %v2374
        %v2381 = vmul.f32 %v2360, %v2374
        %v2382 = vmul.f32 %v2361, %v2374
        %v2383 = vmul.f32 %v2362, %v2374
        %v2384 = vmul.f32 %v2363, %v2374
        %v2385 = vmul.f32 %v2364, %v2374
        %v2386 = vmul.f32 %v2365, %v2374
        %v2387 = vmul.f32 %v2366, %v2374
        %v2388 = vmul.f32 %v2367, %v2374
        %v2389 = vmul.f32 %v2368, %v2374
        %v2390 = vmul.f32 %v2369, %v2374
        %v2391 = vld [vmem:[%s4 + $0x2] sm:$0x1]
        %v2392 = vlaneseq
        %v2393 = vshrl.u32 %v2392, 7
        %v2394 = vsub.s32 0, %v2393
        %v2395 = vrot.slane %v2391, %v2394
        %v2396 = vadd.f32 %v2375, %v2395
        %v2397 = vadd.f32 %v2376, %v2395
        %v2398 = vadd.f32 %v2377, %v2395
        %v2399 = vadd.f32 %v2378, %v2395
        %v2400 = vadd.f32 %v2379, %v2395
        %v2401 = vadd.f32 %v2380, %v2395
        %v2402 = vadd.f32 %v2381, %v2395
        %v2403 = vadd.f32 %v2382, %v2395
        %v2404 = vadd.f32 %v2383, %v2395
        %v2405 = vadd.f32 %v2384, %v2395
        %v2406 = vadd.f32 %v2385, %v2395
        %v2407 = vadd.f32 %v2386, %v2395
        %v2408 = vadd.f32 %v2387, %v2395
        %v2409 = vadd.f32 %v2388, %v2395
        %v2410 = vadd.f32 %v2389, %v2395
        %v2411 = vadd.f32 %v2390, %v2395
        %2412 = vst [vmem:[#allocation3] sm:$0xff] %v2396
        %2413 = vst [vmem:[#allocation3 + $0x8] sm:$0xff] %v2397
        %2414 = vst [vmem:[#allocation3 + $0x10] sm:$0xff] %v2398
        %2415 = vst [vmem:[#allocation3 + $0x18] sm:$0xff] %v2399
        %2416 = vst [vmem:[#allocation3 + $0x20] sm:$0xff] %v2400
        %2417 = vst [vmem:[#allocation3 + $0x28] sm:$0xff] %v2401
        %2418 = vst [vmem:[#allocation3 + $0x30] sm:$0xff] %v2402
        %2419 = vst [vmem:[#allocation3 + $0x38] sm:$0xff] %v2403
        %2420 = vst [vmem:[#allocation3 + $0x40] sm:$0xff] %v2404
        %2421 = vst [vmem:[#allocation3 + $0x48] sm:$0xff] %v2405
        %2422 = vst [vmem:[#allocation3 + $0x50] sm:$0xff] %v2406
        %2423 = vst [vmem:[#allocation3 + $0x58] sm:$0xff] %v2407
        %2424 = vst [vmem:[#allocation3 + $0x60] sm:$0xff] %v2408
        %2425 = vst [vmem:[#allocation3 + $0x68] sm:$0xff] %v2409
        %2426 = vst [vmem:[#allocation3 + $0x70] sm:$0xff] %v2410
        %2427 = vst [vmem:[#allocation3 + $0x78] sm:$0xff] %v2411
        %v2428 = vld [vmem:[#allocation3] ss:$2 sm:$0xff]
        %s2429 = scalar_lea.vmem [#allocation3], 16
        %v2430 = vld [vmem:[%s2429] ss:$2 sm:$0xff]
        %s2431 = scalar_lea.vmem [#allocation3], 32
        %v2432 = vld [vmem:[%s2431] ss:$2 sm:$0xff]
        %s2433 = scalar_lea.vmem [#allocation3], 48
        %v2434 = vld [vmem:[%s2433] ss:$2 sm:$0xff]
        %s2435 = scalar_lea.vmem [#allocation3], 64
        %v2436 = vld [vmem:[%s2435] ss:$2 sm:$0xff]
        %s2437 = scalar_lea.vmem [#allocation3], 80
        %v2438 = vld [vmem:[%s2437] ss:$2 sm:$0xff]
        %s2439 = scalar_lea.vmem [#allocation3], 96
        %v2440 = vld [vmem:[%s2439] ss:$2 sm:$0xff]
        %s2441 = scalar_lea.vmem [#allocation3], 112
        %v2442 = vld [vmem:[%s2441] ss:$2 sm:$0xff]
        %s2443 = scalar_lea.vmem [#allocation3], 1
        %v2444 = vld [vmem:[%s2443] ss:$2 sm:$0xff]
        %s2445 = scalar_lea.vmem [#allocation3], 17
        %v2446 = vld [vmem:[%s2445] ss:$2 sm:$0xff]
        %s2447 = scalar_lea.vmem [#allocation3], 33
        %v2448 = vld [vmem:[%s2447] ss:$2 sm:$0xff]
        %s2449 = scalar_lea.vmem [#allocation3], 49
        %v2450 = vld [vmem:[%s2449] ss:$2 sm:$0xff]
        %s2451 = scalar_lea.vmem [#allocation3], 65
        %v2452 = vld [vmem:[%s2451] ss:$2 sm:$0xff]
        %s2453 = scalar_lea.vmem [#allocation3], 81
        %v2454 = vld [vmem:[%s2453] ss:$2 sm:$0xff]
        %s2455 = scalar_lea.vmem [#allocation3], 97
        %v2456 = vld [vmem:[%s2455] ss:$2 sm:$0xff]
        %s2457 = scalar_lea.vmem [#allocation3], 113
        %v2458 = vld [vmem:[%s2457] ss:$2 sm:$0xff]
        %v2459 = vmax.f32 %v2428, %v2444
        %v2460 = vmax.f32 %v2430, %v2446
        %v2461 = vmax.f32 %v2432, %v2448
        %v2462 = vmax.f32 %v2434, %v2450
        %v2463 = vmax.f32 %v2436, %v2452
        %v2464 = vmax.f32 %v2438, %v2454
        %v2465 = vmax.f32 %v2440, %v2456
        %v2466 = vmax.f32 %v2442, %v2458
        %2467 = vst [vmem:[%s247] sm:$0xff] %v2459
        %2468 = vst [vmem:[%s247 + $0x8] sm:$0xff] %v2460
        %2469 = vst [vmem:[%s247 + $0x10] sm:$0xff] %v2461
        %2470 = vst [vmem:[%s247 + $0x18] sm:$0xff] %v2462
        %2471 = vst [vmem:[%s247 + $0x20] sm:$0xff] %v2463
        %2472 = vst [vmem:[%s247 + $0x28] sm:$0xff] %v2464
        %2473 = vst [vmem:[%s247 + $0x30] sm:$0xff] %v2465
        %2474 = vst [vmem:[%s247 + $0x38] sm:$0xff] %v2466
        %s2475 = sand.u32 %s159, 1
        %s2476 = scalar_lea.sflag [#allocation5], %s2475
        %s2477 = sand.u32 %s159, 1
        %s2478 = smul.addr %s2477, 64
        %s2479 = scalar_lea.vmem [#allocation4], %s2478
        // Predicated region
        $region45: #{tpu_custom_call.1} parent=43 // pred_check
          %p2480 = pneg %p169
        $region46: #{tpu_custom_call.1} parent=43 // pred_check_branch
          %2482 = sbr.rel (%p2480) target = $region48
        $region47: #{tpu_custom_call.1} parent=43 // pred_region
          %s2483 = smul.u32 8, %s20
          %s2485 = ssub.s32 1024, 1024
          %2486 = vsyncadd %s2476, %s2485
          %s2487 = smul.addr %s2483, 128
          %s2488 = scalar_lea.hbm %s6, %s2487
          %s2489 = sshll.u32 %s2479, 4
          %s2490 = int_to_ptr.vmem [resolvable:$true] %s2489
          %2495 = dma.vmem_to_hbm [thread:$0]  %s2490, 1024, %s2488, %s2476, 128, 128, 8
        $region48: #{tpu_custom_call.1} parent=43 // pred_fallthru
          _
      $region44: #{tpu_custom_call.1} parent=5 // pred_fallthru
        _
      %p2496 = scmp.le.s32.totalorder 2, %s15
      // Predicated region
      $region49: #{tpu_custom_call.1} parent=5 // pred_check
        %p2497 = pneg %p2496
      $region50: #{tpu_custom_call.1} parent=5 // pred_check_branch
        %2499 = sbr.rel (%p2497) target = $region52
      $region51: #{tpu_custom_call.1} parent=5 // pred_region
        %s2500 = ssub.s32 %s15, 2
        // Predicated region
        $region53: #{tpu_custom_call.1} parent=51 // pred_check
          %p2501 = pneg %p175
        $region54: #{tpu_custom_call.1} parent=51 // pred_check_branch
          %2503 = sbr.rel (%p2501) target = $region56
        $region55: #{tpu_custom_call.1} parent=51 // pred_region
          %s2504 = sand.u32 %s160, 1
          %s2505 = scalar_lea.sflag [#allocation5], %s2504
          %s2506 = sand.u32 %s160, 1
          %s2507 = smul.addr %s2506, 64
          %s2508 = scalar_lea.vmem [#allocation4], %s2507
          %2509 = dma.done %s2505, 1024
        $region56: #{tpu_custom_call.1} parent=51 // pred_fallthru
          _
      $region52: #{tpu_custom_call.1} parent=5 // pred_fallthru
        _
    $region6: #{tpu_custom_call.1} parent=1 // loop_footer
      %s19 = sadd.s32 1, %s15
    $region7: #{tpu_custom_call.1} parent=1 // loop_footer_branch
      %14 = sbr.rel target = $region3
    $region8: #{tpu_custom_call.1} parent=1 // loop_exit
      _
    %2510 = vsyncpa [#allocation5], 1
    %s2511 = scalar_lea.sflag [#allocation5], 1
    %2512 = vsyncpa %s2511, 1

</llo_original>
